<compile_context>
chip_gen: v7x
topology: tpu7x:2x2x1
jax: 0.10.0
libtpu: 0.0.40
codegen_flags: <defaults>
</compile_context>

<pallas_src>
import functools
import math

import jax
import jax.numpy as jnp
from jax.experimental import pallas as pl
from jax.experimental.pallas import tpu as pltpu


def _cross_attn_kernel(x_ref, ctx_ref,
                       wq_ref, bq_ref,
                       wkv_ref, bkv_ref,
                       wp_ref, bp_ref,
                       o_ref,
                       *, num_heads, head_dim):
    bt, lq, H = x_ref.shape
    lk = ctx_ref.shape[1]

    # Merge the batch block into the matmul M dimension (leading-dim merge, no relayout)
    # so every projection feeds the MXU Bt*L rows at once.
    x2 = x_ref[...].reshape(bt * lq, H)
    c2 = ctx_ref[...].reshape(bt * lk, H)

    # Q projection -- the 1/sqrt(head_dim) scale is already folded into wq/bq.
    q2 = jnp.dot(x2, wq_ref[...], preferred_element_type=jnp.float32) + bq_ref[...]
    # Fused K/V projection: a single MXU matmul with N = 2H.
    kv = jnp.dot(c2, wkv_ref[...], preferred_element_type=jnp.float32) + bkv_ref[...]

    q3 = q2.reshape(bt, lq, H)
    k3 = kv[:, :H].reshape(bt, lk, H)
    v3 = kv[:, H:].reshape(bt, lk, H)

    # Per-head scaled-dot-product attention, batched over the batch block with 3-D
    # einsums (num_heads is small and static -> unrolled loop, no 4-D relayouts).
    head_outs = []
    for h in range(num_heads):
        lo = h * head_dim
        hi = lo + head_dim
        qh = q3[:, :, lo:hi]                                   # (bt, lq, hd)
        kh = k3[:, :, lo:hi]                                   # (bt, lk, hd)
        vh = v3[:, :, lo:hi]                                   # (bt, lk, hd)

        s = jnp.einsum("bqd,bkd->bqk", qh, kh,
                       preferred_element_type=jnp.float32)     # (bt, lq, lk)
        m = jnp.max(s, axis=-1, keepdims=True)
        e = jnp.exp(s - m)
        p = e * pl.reciprocal(jnp.sum(e, axis=-1, keepdims=True), approx=True)
        # TODO(synk): nn.Dropout on the attention weights is identity in eval mode; not applied.
        head_outs.append(
            jnp.einsum("bqk,bkd->bqd", p, vh,
                       preferred_element_type=jnp.float32))    # (bt, lq, hd)

    ctxv = jnp.concatenate(head_outs, axis=-1).reshape(bt * lq, H)

    out = jnp.dot(ctxv.astype(wp_ref.dtype), wp_ref[...],
                  preferred_element_type=jnp.float32) + bp_ref[...]
    o_ref[...] = out.reshape(bt, lq, H).astype(o_ref.dtype)


def _pick_batch_block(batch, seq_len):
    """Largest divisor of `batch` whose block holds <= ~512 rows, preferring >= 2
    grid steps so both v7x TensorCores get work."""
    max_rows = 512
    divisors = [d for d in range(1, batch + 1) if batch % d == 0]
    fits = [d for d in divisors if d * max(seq_len, 1) <= max_rows] or [1]
    multi = [d for d in fits if batch // d >= 2]
    return max(multi) if multi else max(fits)


def _vmem_limit_bytes(bt, lq, lk, H, act_itemsize, w_itemsize):
    """Rough VMEM budget: double-buffered activation/output blocks + resident weights
    + f32 intermediates with 2x headroom, clamped below v7x's 64 MiB physical VMEM."""
    blocks = 2 * (bt * lq * H + bt * lk * H + bt * lq * H) * act_itemsize
    weights = 2 * (4 * H * H + 4 * H) * w_itemsize
    interm = 4 * (3 * bt * lq * H + 3 * bt * lk * H + 2 * bt * lq * lk)
    est = 2 * (blocks + weights + interm)
    return int(min(max(est, 32 * 1024 * 1024), 56 * 1024 * 1024))


def prepare_params(params, num_heads):
    """One-time weight prep (outside the per-call hot path): transpose to (in, out),
    fuse K/V into one matrix, and fold the attention scale into Q."""
    H = params["wq"].shape[0]
    head_dim = H // num_heads
    scale = 1.0 / math.sqrt(head_dim)
    return {
        "wq": params["wq"].T * scale,
        "bq": params["bq"].reshape(1, H) * scale,
        "wkv": jnp.concatenate([params["wk"].T, params["wv"].T], axis=1),   # (H, 2H)
        "bkv": jnp.concatenate([params["bk"], params["bv"]]).reshape(1, 2 * H),
        "wp": params["wp"].T,
        "bp": params["bp"].reshape(1, H),
    }


def cross_attention(x, context, prep, num_heads, *, batch_block=None):
    B, Lq, H = x.shape
    Lk = context.shape[1]
    head_dim = H // num_heads

    bt = batch_block if batch_block is not None else _pick_batch_block(B, max(Lq, Lk))
    assert B % bt == 0, "batch block must divide the batch size"
    grid = (B // bt,)

    kernel = functools.partial(_cross_attn_kernel,
                               num_heads=num_heads, head_dim=head_dim)

    vmem_limit = _vmem_limit_bytes(bt, Lq, Lk, H,
                                   jnp.dtype(x.dtype).itemsize,
                                   jnp.dtype(prep["wq"].dtype).itemsize)

    out = pl.pallas_call(
        kernel,
        out_shape=jax.ShapeDtypeStruct((B, Lq, H), x.dtype),
        grid_spec=pltpu.PrefetchScalarGridSpec(
            num_scalar_prefetch=0,
            grid=grid,
            in_specs=[
                pl.BlockSpec((bt, Lq, H), lambda i: (i, 0, 0)),       # x
                pl.BlockSpec((bt, Lk, H), lambda i: (i, 0, 0)),       # context
                pl.BlockSpec((H, H), lambda i: (0, 0)),               # wq (scale folded in)
                pl.BlockSpec((1, H), lambda i: (0, 0)),               # bq (scale folded in)
                pl.BlockSpec((H, 2 * H), lambda i: (0, 0)),           # wkv (fused K|V)
                pl.BlockSpec((1, 2 * H), lambda i: (0, 0)),           # bkv (fused)
                pl.BlockSpec((H, H), lambda i: (0, 0)),               # wp
                pl.BlockSpec((1, H), lambda i: (0, 0)),               # bp
            ],
            out_specs=pl.BlockSpec((bt, Lq, H), lambda i: (i, 0, 0)),
        ),
        compiler_params=pltpu.CompilerParams(
            dimension_semantics=("parallel",),
            vmem_limit_bytes=vmem_limit),
    )(x, context, prep["wq"], prep["bq"], prep["wkv"], prep["bkv"],
      prep["wp"], prep["bp"])

    # PyTorch: output.squeeze(1) -> only collapses when Lq == 1.
    if out.shape[1] == 1:
        out = jnp.squeeze(out, axis=1)
    return out


def cross_attention_reference(x, context, params, num_heads):
    """Pure-JAX reference mirroring the PyTorch forward (eval mode)."""
    B, Lq, H = x.shape
    Lk = context.shape[1]
    hd = H // num_heads

    q = x @ params["wq"].T + params["bq"]
    k = context @ params["wk"].T + params["bk"]
    v = context @ params["wv"].T + params["bv"]

    qh = q.reshape(B, Lq, num_heads, hd).transpose(0, 2, 1, 3)
    kh = k.reshape(B, Lk, num_heads, hd).transpose(0, 2, 1, 3)
    vh = v.reshape(B, Lk, num_heads, hd).transpose(0, 2, 1, 3)

    scores = jnp.einsum("bhqd,bhkd->bhqk", qh, kh) / math.sqrt(hd)
    attn = jax.nn.softmax(scores, axis=-1)
    ctxv = jnp.einsum("bhqk,bhkd->bhqd", attn, vh)
    ctxv = ctxv.transpose(0, 2, 1, 3).reshape(B, Lq, H)
    out = ctxv @ params["wp"].T + params["bp"]
    if out.shape[1] == 1:
        out = jnp.squeeze(out, axis=1)
    return out


def init_params(key, hidden_dim):
    """Xavier-normal weights, zero biases (matches _init_weights)."""
    std = math.sqrt(2.0 / (hidden_dim + hidden_dim))
    keys = jax.random.split(key, 4)
    params = {}
    for name, k in zip(["wq", "wk", "wv", "wp"], keys):
        params[name] = std * jax.random.normal(k, (hidden_dim, hidden_dim), jnp.float32)
    for name in ["bq", "bk", "bv", "bp"]:
        params[name] = jnp.zeros((hidden_dim,), jnp.float32)
    return params


if __name__ == "__main__":
    hidden_dim, num_heads = 32, 8

    key = jax.random.PRNGKey(0)
    kx, kc, kp = jax.random.split(key, 3)
    params = init_params(kp, hidden_dim)
    prep = prepare_params(params, num_heads)   # one-time weight prep, out of the hot path

    # Two configs: one batch-element-per-block and one batched (bt=2) block.
    for B, Lq, Lk in ((2, 8, 8), (4, 8, 8)):
        kxb, kcb = jax.random.split(jax.random.fold_in(kx, B))
        x = jax.random.normal(kxb, (B, Lq, hidden_dim), jnp.float32)
        context = jax.random.normal(kcb, (B, Lk, hidden_dim), jnp.float32)

        out = jax.block_until_ready(cross_attention(x, context, prep, num_heads))
        ref = cross_attention_reference(x, context, params, num_heads)
        assert out.shape == ref.shape
        # Tolerance accounts for pl.reciprocal(approx=True) in the softmax normalization.
        err = float(jnp.max(jnp.abs(out - ref)))
        assert err < 1e-2, f"kernel mismatch vs reference: {err}"

    print("KERNEL_OK")
</pallas_src>

<mosaic_0001>
module attributes {stable_mosaic.version = 11 : i64} {
  func.func @_cross_attn_kernel(%arg0: i32, %arg1: memref<1x8x32xf32, #tpu.memory_space<vmem>>, %arg2: memref<1x8x32xf32, #tpu.memory_space<vmem>>, %arg3: memref<32x32xf32, #tpu.memory_space<vmem>>, %arg4: memref<1x32xf32, #tpu.memory_space<vmem>>, %arg5: memref<32x64xf32, #tpu.memory_space<vmem>>, %arg6: memref<1x64xf32, #tpu.memory_space<vmem>>, %arg7: memref<32x32xf32, #tpu.memory_space<vmem>>, %arg8: memref<1x32xf32, #tpu.memory_space<vmem>>, %arg9: memref<1x8x32xf32, #tpu.memory_space<vmem>>) attributes {dimension_semantics = [#tpu.dimension_semantics<parallel>], iteration_bounds = array<i64: 2>, scalar_prefetch = 0 : i64, scratch_operands = 0 : i64, tpu.core_type = #tpu.core_type<tc>, window_params = [{transform_indices = @transform_0, window_bounds = array<i64: 1, 8, 32>}, {transform_indices = @transform_1, window_bounds = array<i64: 1, 8, 32>}, {pipeline_mode = #tpu.pipeline_mode<synchronous>, transform_indices = @transform_2, window_bounds = array<i64: 32, 32>}, {pipeline_mode = #tpu.pipeline_mode<synchronous>, transform_indices = @transform_3, window_bounds = array<i64: 1, 32>}, {pipeline_mode = #tpu.pipeline_mode<synchronous>, transform_indices = @transform_4, window_bounds = array<i64: 32, 64>}, {pipeline_mode = #tpu.pipeline_mode<synchronous>, transform_indices = @transform_5, window_bounds = array<i64: 1, 64>}, {pipeline_mode = #tpu.pipeline_mode<synchronous>, transform_indices = @transform_6, window_bounds = array<i64: 32, 32>}, {pipeline_mode = #tpu.pipeline_mode<synchronous>, transform_indices = @transform_7, window_bounds = array<i64: 1, 32>}, {transform_indices = @transform_8, window_bounds = array<i64: 1, 8, 32>}]} {
    %c0 = arith.constant 0 : index
    %c0_0 = arith.constant 0 : index
    %c0_1 = arith.constant 0 : index
    %0 = vector.load %arg1[%c0, %c0_0, %c0_1] : memref<1x8x32xf32, #tpu.memory_space<vmem>>, vector<1x8x32xf32>
    %1 = vector.shape_cast %0 : vector<1x8x32xf32> to vector<8x32xf32>
    %c0_2 = arith.constant 0 : index
    %c0_3 = arith.constant 0 : index
    %c0_4 = arith.constant 0 : index
    %2 = vector.load %arg2[%c0_2, %c0_3, %c0_4] : memref<1x8x32xf32, #tpu.memory_space<vmem>>, vector<1x8x32xf32>
    %3 = vector.shape_cast %2 : vector<1x8x32xf32> to vector<8x32xf32>
    %c0_5 = arith.constant 0 : index
    %c0_6 = arith.constant 0 : index
    %4 = vector.load %arg3[%c0_5, %c0_6] : memref<32x32xf32, #tpu.memory_space<vmem>>, vector<32x32xf32>
    %cst = arith.constant dense<0.000000e+00> : vector<8x32xf32>
    %5 = tpu.matmul %1, %4, %cst {dimension_numbers = #tpu.dot_dimension_numbers<[1], [0], [0], [1], [0, 0, 1, 1], [], []>} : vector<8x32xf32>, vector<32x32xf32>, vector<8x32xf32> -> vector<8x32xf32>
    %c0_7 = arith.constant 0 : index
    %c0_8 = arith.constant 0 : index
    %6 = vector.load %arg4[%c0_7, %c0_8] : memref<1x32xf32, #tpu.memory_space<vmem>>, vector<1x32xf32>
    %7 = vector.broadcast %6 : vector<1x32xf32> to vector<8x32xf32>
    %8 = arith.addf %5, %7 : vector<8x32xf32>
    %c0_9 = arith.constant 0 : index
    %c0_10 = arith.constant 0 : index
    %9 = vector.load %arg5[%c0_9, %c0_10] : memref<32x64xf32, #tpu.memory_space<vmem>>, vector<32x64xf32>
    %cst_11 = arith.constant dense<0.000000e+00> : vector<8x64xf32>
    %10 = tpu.matmul %3, %9, %cst_11 {dimension_numbers = #tpu.dot_dimension_numbers<[1], [0], [0], [1], [0, 0, 1, 1], [], []>} : vector<8x32xf32>, vector<32x64xf32>, vector<8x64xf32> -> vector<8x64xf32>
    %c0_12 = arith.constant 0 : index
    %c0_13 = arith.constant 0 : index
    %11 = vector.load %arg6[%c0_12, %c0_13] : memref<1x64xf32, #tpu.memory_space<vmem>>, vector<1x64xf32>
    %12 = vector.broadcast %11 : vector<1x64xf32> to vector<8x64xf32>
    %13 = arith.addf %10, %12 : vector<8x64xf32>
    %14 = vector.shape_cast %8 : vector<8x32xf32> to vector<1x8x32xf32>
    %15 = vector.extract_strided_slice %13 {offsets = [0, 0], sizes = [8, 32], strides = [1, 1]} : vector<8x64xf32> to vector<8x32xf32>
    %16 = vector.shape_cast %15 : vector<8x32xf32> to vector<1x8x32xf32>
    %17 = vector.extract_strided_slice %13 {offsets = [0, 32], sizes = [8, 32], strides = [1, 1]} : vector<8x64xf32> to vector<8x32xf32>
    %18 = vector.shape_cast %17 : vector<8x32xf32> to vector<1x8x32xf32>
    %19 = vector.extract_strided_slice %14 {offsets = [0, 0, 0], sizes = [1, 8, 4], strides = [1, 1, 1]} : vector<1x8x32xf32> to vector<1x8x4xf32>
    %20 = vector.extract_strided_slice %16 {offsets = [0, 0, 0], sizes = [1, 8, 4], strides = [1, 1, 1]} : vector<1x8x32xf32> to vector<1x8x4xf32>
    %21 = vector.extract_strided_slice %18 {offsets = [0, 0, 0], sizes = [1, 8, 4], strides = [1, 1, 1]} : vector<1x8x32xf32> to vector<1x8x4xf32>
    "tpu.trace_start"() <{level = 10 : i32, message = "bqd,bkd->bqk"}> : () -> ()
    %cst_14 = arith.constant dense<0.000000e+00> : vector<1x8x8xf32>
    %22 = tpu.matmul %19, %20, %cst_14 {dimension_numbers = #tpu.dot_dimension_numbers<[2], [2], [1], [1], [0, 0, 0, 1, 1, 1], [0], [0]>} : vector<1x8x4xf32>, vector<1x8x4xf32>, vector<1x8x8xf32> -> vector<1x8x8xf32>
    "tpu.trace_stop"() : () -> ()
    %cst_15 = arith.constant dense<0xFF800000> : vector<1x8xf32>
    %23 = vector.multi_reduction <maximumf>, %22, %cst_15 [2] : vector<1x8x8xf32> to vector<1x8xf32>
    %24 = vector.shape_cast %23 : vector<1x8xf32> to vector<1x8x1xf32>
    %25 = vector.broadcast %24 : vector<1x8x1xf32> to vector<1x8x8xf32>
    %26 = arith.subf %22, %25 : vector<1x8x8xf32>
    %27 = math.exp %26 : vector<1x8x8xf32>
    %cst_16 = arith.constant dense<0.000000e+00> : vector<1x8xf32>
    %28 = vector.multi_reduction <add>, %27, %cst_16 [2] : vector<1x8x8xf32> to vector<1x8xf32>
    %29 = vector.shape_cast %28 : vector<1x8xf32> to vector<1x8x1xf32>
    %30 = tpu.reciprocal %29 {approx = true} : vector<1x8x1xf32> -> vector<1x8x1xf32>
    %31 = vector.broadcast %30 : vector<1x8x1xf32> to vector<1x8x8xf32>
    %32 = arith.mulf %27, %31 : vector<1x8x8xf32>
    "tpu.trace_start"() <{level = 10 : i32, message = "bqk,bkd->bqd"}> : () -> ()
    %cst_17 = arith.constant dense<0.000000e+00> : vector<1x8x4xf32>
    %33 = tpu.matmul %32, %21, %cst_17 {dimension_numbers = #tpu.dot_dimension_numbers<[2], [1], [1], [2], [0, 0, 0, 1, 1, 2], [0], [0]>} : vector<1x8x8xf32>, vector<1x8x4xf32>, vector<1x8x4xf32> -> vector<1x8x4xf32>
    "tpu.trace_stop"() : () -> ()
    %34 = vector.extract_strided_slice %14 {offsets = [0, 0, 4], sizes = [1, 8, 4], strides = [1, 1, 1]} : vector<1x8x32xf32> to vector<1x8x4xf32>
    %35 = vector.extract_strided_slice %16 {offsets = [0, 0, 4], sizes = [1, 8, 4], strides = [1, 1, 1]} : vector<1x8x32xf32> to vector<1x8x4xf32>
    %36 = vector.extract_strided_slice %18 {offsets = [0, 0, 4], sizes = [1, 8, 4], strides = [1, 1, 1]} : vector<1x8x32xf32> to vector<1x8x4xf32>
    "tpu.trace_start"() <{level = 10 : i32, message = "bqd,bkd->bqk"}> : () -> ()
    %cst_18 = arith.constant dense<0.000000e+00> : vector<1x8x8xf32>
    %37 = tpu.matmul %34, %35, %cst_18 {dimension_numbers = #tpu.dot_dimension_numbers<[2], [2], [1], [1], [0, 0, 0, 1, 1, 1], [0], [0]>} : vector<1x8x4xf32>, vector<1x8x4xf32>, vector<1x8x8xf32> -> vector<1x8x8xf32>
    "tpu.trace_stop"() : () -> ()
    %cst_19 = arith.constant dense<0xFF800000> : vector<1x8xf32>
    %38 = vector.multi_reduction <maximumf>, %37, %cst_19 [2] : vector<1x8x8xf32> to vector<1x8xf32>
    %39 = vector.shape_cast %38 : vector<1x8xf32> to vector<1x8x1xf32>
    %40 = vector.broadcast %39 : vector<1x8x1xf32> to vector<1x8x8xf32>
    %41 = arith.subf %37, %40 : vector<1x8x8xf32>
    %42 = math.exp %41 : vector<1x8x8xf32>
    %cst_20 = arith.constant dense<0.000000e+00> : vector<1x8xf32>
    %43 = vector.multi_reduction <add>, %42, %cst_20 [2] : vector<1x8x8xf32> to vector<1x8xf32>
    %44 = vector.shape_cast %43 : vector<1x8xf32> to vector<1x8x1xf32>
    %45 = tpu.reciprocal %44 {approx = true} : vector<1x8x1xf32> -> vector<1x8x1xf32>
    %46 = vector.broadcast %45 : vector<1x8x1xf32> to vector<1x8x8xf32>
    %47 = arith.mulf %42, %46 : vector<1x8x8xf32>
    "tpu.trace_start"() <{level = 10 : i32, message = "bqk,bkd->bqd"}> : () -> ()
    %cst_21 = arith.constant dense<0.000000e+00> : vector<1x8x4xf32>
    %48 = tpu.matmul %47, %36, %cst_21 {dimension_numbers = #tpu.dot_dimension_numbers<[2], [1], [1], [2], [0, 0, 0, 1, 1, 2], [0], [0]>} : vector<1x8x8xf32>, vector<1x8x4xf32>, vector<1x8x4xf32> -> vector<1x8x4xf32>
    "tpu.trace_stop"() : () -> ()
    %49 = vector.extract_strided_slice %14 {offsets = [0, 0, 8], sizes = [1, 8, 4], strides = [1, 1, 1]} : vector<1x8x32xf32> to vector<1x8x4xf32>
    %50 = vector.extract_strided_slice %16 {offsets = [0, 0, 8], sizes = [1, 8, 4], strides = [1, 1, 1]} : vector<1x8x32xf32> to vector<1x8x4xf32>
    %51 = vector.extract_strided_slice %18 {offsets = [0, 0, 8], sizes = [1, 8, 4], strides = [1, 1, 1]} : vector<1x8x32xf32> to vector<1x8x4xf32>
    "tpu.trace_start"() <{level = 10 : i32, message = "bqd,bkd->bqk"}> : () -> ()
    %cst_22 = arith.constant dense<0.000000e+00> : vector<1x8x8xf32>
    %52 = tpu.matmul %49, %50, %cst_22 {dimension_numbers = #tpu.dot_dimension_numbers<[2], [2], [1], [1], [0, 0, 0, 1, 1, 1], [0], [0]>} : vector<1x8x4xf32>, vector<1x8x4xf32>, vector<1x8x8xf32> -> vector<1x8x8xf32>
    "tpu.trace_stop"() : () -> ()
    %cst_23 = arith.constant dense<0xFF800000> : vector<1x8xf32>
    %53 = vector.multi_reduction <maximumf>, %52, %cst_23 [2] : vector<1x8x8xf32> to vector<1x8xf32>
    %54 = vector.shape_cast %53 : vector<1x8xf32> to vector<1x8x1xf32>
    %55 = vector.broadcast %54 : vector<1x8x1xf32> to vector<1x8x8xf32>
    %56 = arith.subf %52, %55 : vector<1x8x8xf32>
    %57 = math.exp %56 : vector<1x8x8xf32>
    %cst_24 = arith.constant dense<0.000000e+00> : vector<1x8xf32>
    %58 = vector.multi_reduction <add>, %57, %cst_24 [2] : vector<1x8x8xf32> to vector<1x8xf32>
    %59 = vector.shape_cast %58 : vector<1x8xf32> to vector<1x8x1xf32>
    %60 = tpu.reciprocal %59 {approx = true} : vector<1x8x1xf32> -> vector<1x8x1xf32>
    %61 = vector.broadcast %60 : vector<1x8x1xf32> to vector<1x8x8xf32>
    %62 = arith.mulf %57, %61 : vector<1x8x8xf32>
    "tpu.trace_start"() <{level = 10 : i32, message = "bqk,bkd->bqd"}> : () -> ()
    %cst_25 = arith.constant dense<0.000000e+00> : vector<1x8x4xf32>
    %63 = tpu.matmul %62, %51, %cst_25 {dimension_numbers = #tpu.dot_dimension_numbers<[2], [1], [1], [2], [0, 0, 0, 1, 1, 2], [0], [0]>} : vector<1x8x8xf32>, vector<1x8x4xf32>, vector<1x8x4xf32> -> vector<1x8x4xf32>
    "tpu.trace_stop"() : () -> ()
    %64 = vector.extract_strided_slice %14 {offsets = [0, 0, 12], sizes = [1, 8, 4], strides = [1, 1, 1]} : vector<1x8x32xf32> to vector<1x8x4xf32>
    %65 = vector.extract_strided_slice %16 {offsets = [0, 0, 12], sizes = [1, 8, 4], strides = [1, 1, 1]} : vector<1x8x32xf32> to vector<1x8x4xf32>
    %66 = vector.extract_strided_slice %18 {offsets = [0, 0, 12], sizes = [1, 8, 4], strides = [1, 1, 1]} : vector<1x8x32xf32> to vector<1x8x4xf32>
    "tpu.trace_start"() <{level = 10 : i32, message = "bqd,bkd->bqk"}> : () -> ()
    %cst_26 = arith.constant dense<0.000000e+00> : vector<1x8x8xf32>
    %67 = tpu.matmul %64, %65, %cst_26 {dimension_numbers = #tpu.dot_dimension_numbers<[2], [2], [1], [1], [0, 0, 0, 1, 1, 1], [0], [0]>} : vector<1x8x4xf32>, vector<1x8x4xf32>, vector<1x8x8xf32> -> vector<1x8x8xf32>
    "tpu.trace_stop"() : () -> ()
    %cst_27 = arith.constant dense<0xFF800000> : vector<1x8xf32>
    %68 = vector.multi_reduction <maximumf>, %67, %cst_27 [2] : vector<1x8x8xf32> to vector<1x8xf32>
    %69 = vector.shape_cast %68 : vector<1x8xf32> to vector<1x8x1xf32>
    %70 = vector.broadcast %69 : vector<1x8x1xf32> to vector<1x8x8xf32>
    %71 = arith.subf %67, %70 : vector<1x8x8xf32>
    %72 = math.exp %71 : vector<1x8x8xf32>
    %cst_28 = arith.constant dense<0.000000e+00> : vector<1x8xf32>
    %73 = vector.multi_reduction <add>, %72, %cst_28 [2] : vector<1x8x8xf32> to vector<1x8xf32>
    %74 = vector.shape_cast %73 : vector<1x8xf32> to vector<1x8x1xf32>
    %75 = tpu.reciprocal %74 {approx = true} : vector<1x8x1xf32> -> vector<1x8x1xf32>
    %76 = vector.broadcast %75 : vector<1x8x1xf32> to vector<1x8x8xf32>
    %77 = arith.mulf %72, %76 : vector<1x8x8xf32>
    "tpu.trace_start"() <{level = 10 : i32, message = "bqk,bkd->bqd"}> : () -> ()
    %cst_29 = arith.constant dense<0.000000e+00> : vector<1x8x4xf32>
    %78 = tpu.matmul %77, %66, %cst_29 {dimension_numbers = #tpu.dot_dimension_numbers<[2], [1], [1], [2], [0, 0, 0, 1, 1, 2], [0], [0]>} : vector<1x8x8xf32>, vector<1x8x4xf32>, vector<1x8x4xf32> -> vector<1x8x4xf32>
    "tpu.trace_stop"() : () -> ()
    %79 = vector.extract_strided_slice %14 {offsets = [0, 0, 16], sizes = [1, 8, 4], strides = [1, 1, 1]} : vector<1x8x32xf32> to vector<1x8x4xf32>
    %80 = vector.extract_strided_slice %16 {offsets = [0, 0, 16], sizes = [1, 8, 4], strides = [1, 1, 1]} : vector<1x8x32xf32> to vector<1x8x4xf32>
    %81 = vector.extract_strided_slice %18 {offsets = [0, 0, 16], sizes = [1, 8, 4], strides = [1, 1, 1]} : vector<1x8x32xf32> to vector<1x8x4xf32>
    "tpu.trace_start"() <{level = 10 : i32, message = "bqd,bkd->bqk"}> : () -> ()
    %cst_30 = arith.constant dense<0.000000e+00> : vector<1x8x8xf32>
    %82 = tpu.matmul %79, %80, %cst_30 {dimension_numbers = #tpu.dot_dimension_numbers<[2], [2], [1], [1], [0, 0, 0, 1, 1, 1], [0], [0]>} : vector<1x8x4xf32>, vector<1x8x4xf32>, vector<1x8x8xf32> -> vector<1x8x8xf32>
    "tpu.trace_stop"() : () -> ()
    %cst_31 = arith.constant dense<0xFF800000> : vector<1x8xf32>
    %83 = vector.multi_reduction <maximumf>, %82, %cst_31 [2] : vector<1x8x8xf32> to vector<1x8xf32>
    %84 = vector.shape_cast %83 : vector<1x8xf32> to vector<1x8x1xf32>
    %85 = vector.broadcast %84 : vector<1x8x1xf32> to vector<1x8x8xf32>
    %86 = arith.subf %82, %85 : vector<1x8x8xf32>
    %87 = math.exp %86 : vector<1x8x8xf32>
    %cst_32 = arith.constant dense<0.000000e+00> : vector<1x8xf32>
    %88 = vector.multi_reduction <add>, %87, %cst_32 [2] : vector<1x8x8xf32> to vector<1x8xf32>
    %89 = vector.shape_cast %88 : vector<1x8xf32> to vector<1x8x1xf32>
    %90 = tpu.reciprocal %89 {approx = true} : vector<1x8x1xf32> -> vector<1x8x1xf32>
    %91 = vector.broadcast %90 : vector<1x8x1xf32> to vector<1x8x8xf32>
    %92 = arith.mulf %87, %91 : vector<1x8x8xf32>
    "tpu.trace_start"() <{level = 10 : i32, message = "bqk,bkd->bqd"}> : () -> ()
    %cst_33 = arith.constant dense<0.000000e+00> : vector<1x8x4xf32>
    %93 = tpu.matmul %92, %81, %cst_33 {dimension_numbers = #tpu.dot_dimension_numbers<[2], [1], [1], [2], [0, 0, 0, 1, 1, 2], [0], [0]>} : vector<1x8x8xf32>, vector<1x8x4xf32>, vector<1x8x4xf32> -> vector<1x8x4xf32>
    "tpu.trace_stop"() : () -> ()
    %94 = vector.extract_strided_slice %14 {offsets = [0, 0, 20], sizes = [1, 8, 4], strides = [1, 1, 1]} : vector<1x8x32xf32> to vector<1x8x4xf32>
    %95 = vector.extract_strided_slice %16 {offsets = [0, 0, 20], sizes = [1, 8, 4], strides = [1, 1, 1]} : vector<1x8x32xf32> to vector<1x8x4xf32>
    %96 = vector.extract_strided_slice %18 {offsets = [0, 0, 20], sizes = [1, 8, 4], strides = [1, 1, 1]} : vector<1x8x32xf32> to vector<1x8x4xf32>
    "tpu.trace_start"() <{level = 10 : i32, message = "bqd,bkd->bqk"}> : () -> ()
    %cst_34 = arith.constant dense<0.000000e+00> : vector<1x8x8xf32>
    %97 = tpu.matmul %94, %95, %cst_34 {dimension_numbers = #tpu.dot_dimension_numbers<[2], [2], [1], [1], [0, 0, 0, 1, 1, 1], [0], [0]>} : vector<1x8x4xf32>, vector<1x8x4xf32>, vector<1x8x8xf32> -> vector<1x8x8xf32>
    "tpu.trace_stop"() : () -> ()
    %cst_35 = arith.constant dense<0xFF800000> : vector<1x8xf32>
    %98 = vector.multi_reduction <maximumf>, %97, %cst_35 [2] : vector<1x8x8xf32> to vector<1x8xf32>
    %99 = vector.shape_cast %98 : vector<1x8xf32> to vector<1x8x1xf32>
    %100 = vector.broadcast %99 : vector<1x8x1xf32> to vector<1x8x8xf32>
    %101 = arith.subf %97, %100 : vector<1x8x8xf32>
    %102 = math.exp %101 : vector<1x8x8xf32>
    %cst_36 = arith.constant dense<0.000000e+00> : vector<1x8xf32>
    %103 = vector.multi_reduction <add>, %102, %cst_36 [2] : vector<1x8x8xf32> to vector<1x8xf32>
    %104 = vector.shape_cast %103 : vector<1x8xf32> to vector<1x8x1xf32>
    %105 = tpu.reciprocal %104 {approx = true} : vector<1x8x1xf32> -> vector<1x8x1xf32>
    %106 = vector.broadcast %105 : vector<1x8x1xf32> to vector<1x8x8xf32>
    %107 = arith.mulf %102, %106 : vector<1x8x8xf32>
    "tpu.trace_start"() <{level = 10 : i32, message = "bqk,bkd->bqd"}> : () -> ()
    %cst_37 = arith.constant dense<0.000000e+00> : vector<1x8x4xf32>
    %108 = tpu.matmul %107, %96, %cst_37 {dimension_numbers = #tpu.dot_dimension_numbers<[2], [1], [1], [2], [0, 0, 0, 1, 1, 2], [0], [0]>} : vector<1x8x8xf32>, vector<1x8x4xf32>, vector<1x8x4xf32> -> vector<1x8x4xf32>
    "tpu.trace_stop"() : () -> ()
    %109 = vector.extract_strided_slice %14 {offsets = [0, 0, 24], sizes = [1, 8, 4], strides = [1, 1, 1]} : vector<1x8x32xf32> to vector<1x8x4xf32>
    %110 = vector.extract_strided_slice %16 {offsets = [0, 0, 24], sizes = [1, 8, 4], strides = [1, 1, 1]} : vector<1x8x32xf32> to vector<1x8x4xf32>
    %111 = vector.extract_strided_slice %18 {offsets = [0, 0, 24], sizes = [1, 8, 4], strides = [1, 1, 1]} : vector<1x8x32xf32> to vector<1x8x4xf32>
    "tpu.trace_start"() <{level = 10 : i32, message = "bqd,bkd->bqk"}> : () -> ()
    %cst_38 = arith.constant dense<0.000000e+00> : vector<1x8x8xf32>
    %112 = tpu.matmul %109, %110, %cst_38 {dimension_numbers = #tpu.dot_dimension_numbers<[2], [2], [1], [1], [0, 0, 0, 1, 1, 1], [0], [0]>} : vector<1x8x4xf32>, vector<1x8x4xf32>, vector<1x8x8xf32> -> vector<1x8x8xf32>
    "tpu.trace_stop"() : () -> ()
    %cst_39 = arith.constant dense<0xFF800000> : vector<1x8xf32>
    %113 = vector.multi_reduction <maximumf>, %112, %cst_39 [2] : vector<1x8x8xf32> to vector<1x8xf32>
    %114 = vector.shape_cast %113 : vector<1x8xf32> to vector<1x8x1xf32>
    %115 = vector.broadcast %114 : vector<1x8x1xf32> to vector<1x8x8xf32>
    %116 = arith.subf %112, %115 : vector<1x8x8xf32>
    %117 = math.exp %116 : vector<1x8x8xf32>
    %cst_40 = arith.constant dense<0.000000e+00> : vector<1x8xf32>
    %118 = vector.multi_reduction <add>, %117, %cst_40 [2] : vector<1x8x8xf32> to vector<1x8xf32>
    %119 = vector.shape_cast %118 : vector<1x8xf32> to vector<1x8x1xf32>
    %120 = tpu.reciprocal %119 {approx = true} : vector<1x8x1xf32> -> vector<1x8x1xf32>
    %121 = vector.broadcast %120 : vector<1x8x1xf32> to vector<1x8x8xf32>
    %122 = arith.mulf %117, %121 : vector<1x8x8xf32>
    "tpu.trace_start"() <{level = 10 : i32, message = "bqk,bkd->bqd"}> : () -> ()
    %cst_41 = arith.constant dense<0.000000e+00> : vector<1x8x4xf32>
    %123 = tpu.matmul %122, %111, %cst_41 {dimension_numbers = #tpu.dot_dimension_numbers<[2], [1], [1], [2], [0, 0, 0, 1, 1, 2], [0], [0]>} : vector<1x8x8xf32>, vector<1x8x4xf32>, vector<1x8x4xf32> -> vector<1x8x4xf32>
    "tpu.trace_stop"() : () -> ()
    %124 = vector.extract_strided_slice %14 {offsets = [0, 0, 28], sizes = [1, 8, 4], strides = [1, 1, 1]} : vector<1x8x32xf32> to vector<1x8x4xf32>
    %125 = vector.extract_strided_slice %16 {offsets = [0, 0, 28], sizes = [1, 8, 4], strides = [1, 1, 1]} : vector<1x8x32xf32> to vector<1x8x4xf32>
    %126 = vector.extract_strided_slice %18 {offsets = [0, 0, 28], sizes = [1, 8, 4], strides = [1, 1, 1]} : vector<1x8x32xf32> to vector<1x8x4xf32>
    "tpu.trace_start"() <{level = 10 : i32, message = "bqd,bkd->bqk"}> : () -> ()
    %cst_42 = arith.constant dense<0.000000e+00> : vector<1x8x8xf32>
    %127 = tpu.matmul %124, %125, %cst_42 {dimension_numbers = #tpu.dot_dimension_numbers<[2], [2], [1], [1], [0, 0, 0, 1, 1, 1], [0], [0]>} : vector<1x8x4xf32>, vector<1x8x4xf32>, vector<1x8x8xf32> -> vector<1x8x8xf32>
    "tpu.trace_stop"() : () -> ()
    %cst_43 = arith.constant dense<0xFF800000> : vector<1x8xf32>
    %128 = vector.multi_reduction <maximumf>, %127, %cst_43 [2] : vector<1x8x8xf32> to vector<1x8xf32>
    %129 = vector.shape_cast %128 : vector<1x8xf32> to vector<1x8x1xf32>
    %130 = vector.broadcast %129 : vector<1x8x1xf32> to vector<1x8x8xf32>
    %131 = arith.subf %127, %130 : vector<1x8x8xf32>
    %132 = math.exp %131 : vector<1x8x8xf32>
    %cst_44 = arith.constant dense<0.000000e+00> : vector<1x8xf32>
    %133 = vector.multi_reduction <add>, %132, %cst_44 [2] : vector<1x8x8xf32> to vector<1x8xf32>
    %134 = vector.shape_cast %133 : vector<1x8xf32> to vector<1x8x1xf32>
    %135 = tpu.reciprocal %134 {approx = true} : vector<1x8x1xf32> -> vector<1x8x1xf32>
    %136 = vector.broadcast %135 : vector<1x8x1xf32> to vector<1x8x8xf32>
    %137 = arith.mulf %132, %136 : vector<1x8x8xf32>
    "tpu.trace_start"() <{level = 10 : i32, message = "bqk,bkd->bqd"}> : () -> ()
    %cst_45 = arith.constant dense<0.000000e+00> : vector<1x8x4xf32>
    %138 = tpu.matmul %137, %126, %cst_45 {dimension_numbers = #tpu.dot_dimension_numbers<[2], [1], [1], [2], [0, 0, 0, 1, 1, 2], [0], [0]>} : vector<1x8x8xf32>, vector<1x8x4xf32>, vector<1x8x4xf32> -> vector<1x8x4xf32>
    "tpu.trace_stop"() : () -> ()
    %139 = tpu.concatenate %33, %48, %63, %78, %93, %108, %123, %138 in 2 : vector<1x8x4xf32>, vector<1x8x4xf32>, vector<1x8x4xf32>, vector<1x8x4xf32>, vector<1x8x4xf32>, vector<1x8x4xf32>, vector<1x8x4xf32>, vector<1x8x4xf32> -> vector<1x8x32xf32>
    %140 = vector.shape_cast %139 : vector<1x8x32xf32> to vector<8x32xf32>
    %c0_46 = arith.constant 0 : index
    %c0_47 = arith.constant 0 : index
    %141 = vector.load %arg7[%c0_46, %c0_47] : memref<32x32xf32, #tpu.memory_space<vmem>>, vector<32x32xf32>
    %cst_48 = arith.constant dense<0.000000e+00> : vector<8x32xf32>
    %142 = tpu.matmul %140, %141, %cst_48 {dimension_numbers = #tpu.dot_dimension_numbers<[1], [0], [0], [1], [0, 0, 1, 1], [], []>} : vector<8x32xf32>, vector<32x32xf32>, vector<8x32xf32> -> vector<8x32xf32>
    %c0_49 = arith.constant 0 : index
    %c0_50 = arith.constant 0 : index
    %143 = vector.load %arg8[%c0_49, %c0_50] : memref<1x32xf32, #tpu.memory_space<vmem>>, vector<1x32xf32>
    %144 = vector.broadcast %143 : vector<1x32xf32> to vector<8x32xf32>
    %145 = arith.addf %142, %144 : vector<8x32xf32>
    %146 = vector.shape_cast %145 : vector<8x32xf32> to vector<1x8x32xf32>
    %c0_51 = arith.constant 0 : index
    %c0_52 = arith.constant 0 : index
    %c0_53 = arith.constant 0 : index
    %147 = vector.load %arg9[%c0_51, %c0_52, %c0_53] : memref<1x8x32xf32, #tpu.memory_space<vmem>>, vector<1x8x32xf32>
    tpu.vector_store %arg9[%c0_51, %c0_52, %c0_53], %146 {strides = array<i32>} : memref<1x8x32xf32, #tpu.memory_space<vmem>>, vector<1x8x32xf32>,
    return
  }
  func.func @transform_0(%arg0: i32) -> (i32, i32, i32) {
    %c0_i32 = arith.constant 0 : i32
    %c0_i32_0 = arith.constant 0 : i32
    %c0_i32_1 = arith.constant 0 : i32
    return %arg0, %c0_i32, %c0_i32_0 : i32, i32, i32
  }
  func.func @transform_1(%arg0: i32) -> (i32, i32, i32) {
    %c0_i32 = arith.constant 0 : i32
    %c0_i32_0 = arith.constant 0 : i32
    %c0_i32_1 = arith.constant 0 : i32
    return %arg0, %c0_i32, %c0_i32_0 : i32, i32, i32
  }
  func.func @transform_2(%arg0: i32) -> (i32, i32) {
    %c0_i32 = arith.constant 0 : i32
    %c0_i32_0 = arith.constant 0 : i32
    %c0_i32_1 = arith.constant 0 : i32
    return %c0_i32, %c0_i32_0 : i32, i32
  }
  func.func @transform_3(%arg0: i32) -> (i32, i32) {
    %c0_i32 = arith.constant 0 : i32
    %c0_i32_0 = arith.constant 0 : i32
    %c0_i32_1 = arith.constant 0 : i32
    return %c0_i32, %c0_i32_0 : i32, i32
  }
  func.func @transform_4(%arg0: i32) -> (i32, i32) {
    %c0_i32 = arith.constant 0 : i32
    %c0_i32_0 = arith.constant 0 : i32
    %c0_i32_1 = arith.constant 0 : i32
    return %c0_i32, %c0_i32_0 : i32, i32
  }
  func.func @transform_5(%arg0: i32) -> (i32, i32) {
    %c0_i32 = arith.constant 0 : i32
    %c0_i32_0 = arith.constant 0 : i32
    %c0_i32_1 = arith.constant 0 : i32
    return %c0_i32, %c0_i32_0 : i32, i32
  }
  func.func @transform_6(%arg0: i32) -> (i32, i32) {
    %c0_i32 = arith.constant 0 : i32
    %c0_i32_0 = arith.constant 0 : i32
    %c0_i32_1 = arith.constant 0 : i32
    return %c0_i32, %c0_i32_0 : i32, i32
  }
  func.func @transform_7(%arg0: i32) -> (i32, i32) {
    %c0_i32 = arith.constant 0 : i32
    %c0_i32_0 = arith.constant 0 : i32
    %c0_i32_1 = arith.constant 0 : i32
    return %c0_i32, %c0_i32_0 : i32, i32
  }
  func.func @transform_8(%arg0: i32) -> (i32, i32, i32) {
    %c0_i32 = arith.constant 0 : i32
    %c0_i32_0 = arith.constant 0 : i32
    %c0_i32_1 = arith.constant 0 : i32
    return %arg0, %c0_i32, %c0_i32_0 : i32, i32, i32
  }
}

</mosaic_0001>

<llo_original>
// kernel: tpu_custom_call.1
$region0: #{tpu_custom_call.1}
  #allocation0 [shape = 'u32[]', space=smem, size = 0x4, offset = 0x4, fixed_abs, tag = 'smem constant byte address 0x4 - core index']
  #allocation1 [shape = 'u32[144,128]{1,0:T(1,128)}', space=vmem, size = 0x12000, scoped, tag = 'internal scratch']
  %s0 = inlined_call_operand.hbm [shape: f32[2,8,32], index: 0, kind: input, shape index: {}]
  %s1 = inlined_call_operand.hbm [shape: f32[2,8,32], index: 1, kind: input, shape index: {}]
  %s2 = inlined_call_operand.hbm [shape: f32[32,32], index: 2, kind: input, shape index: {}]
  %s3 = inlined_call_operand.vmem [shape: f32[1,32], index: 3, kind: input, shape index: {}]
  %s4 = inlined_call_operand.hbm [shape: f32[32,64], index: 4, kind: input, shape index: {}]
  %s5 = inlined_call_operand.vmem [shape: f32[1,64], index: 5, kind: input, shape index: {}]
  %s6 = inlined_call_operand.hbm [shape: f32[32,32], index: 6, kind: input, shape index: {}]
  %s7 = inlined_call_operand.vmem [shape: f32[1,32], index: 7, kind: input, shape index: {}]
  %s8 = inlined_call_operand.hbm [shape: f32[2,8,32], index: 8, kind: output, shape index: {}]
  %s9 = sld [smem:[#allocation0]]
  $region85: #{tpu_custom_call.1} parent=0
    _
  %s11 = ssub.s32 1, %s9
  %s12 = scalar_select 0, %s11, %s9
  $region1: #{tpu_custom_call.1} parent=0
    #allocation2 [shape = 'u8[8192]{0}', space=vmem, size = 0x2000, scoped, tag = 'input window, operand 0']
    #allocation3 [shape = 's32[2]{0}', space=sflag, size = 0x8, scoped, tag = 'scoped memory for tpu_custom_call.1']
    #allocation4 [shape = 's32[2]{0}', space=sflag, size = 0x8, scoped, tag = 'scoped memory for tpu_custom_call.1']
    #allocation5 [shape = 'u8[8192]{0}', space=vmem, size = 0x2000, scoped, tag = 'input window, operand 1']
    #allocation6 [shape = 's32[2]{0}', space=sflag, size = 0x8, scoped, tag = 'scoped memory for tpu_custom_call.1']
    #allocation7 [shape = 'u8[16384]{0}', space=vmem, size = 0x4000, scoped, tag = 'input window, operand 2, single buffered']
    #allocation8 [shape = 'u8[16384]{0}', space=vmem, size = 0x4000, scoped, tag = 'input window, operand 4, single buffered']
    #allocation9 [shape = 's32[1]{0}', space=sflag, size = 0x4, scoped, tag = 'scoped memory for tpu_custom_call.1']
    #allocation10 [shape = 'u8[16384]{0}', space=vmem, size = 0x4000, scoped, tag = 'input window, operand 6, single buffered']
    #allocation11 [shape = 'u8[8192]{0}', space=vmem, size = 0x2000, scoped, tag = 'output window, operand 0']
    %13 = vsyncpa [#allocation3], 0
    %s14 = scalar_lea.sflag [#allocation3], 1
    %15 = vsyncpa %s14, 0
    %16 = vsyncpa [#allocation6], 0
    %s17 = scalar_lea.sflag [#allocation6], 1
    %18 = vsyncpa %s17, 0
    %19 = vsyncpa [#allocation9], 0
    %20 = vsyncpa [#allocation4], 0
    %s21 = scalar_lea.sflag [#allocation4], 1
    %22 = vsyncpa %s21, 0
    loop: start=0, step=1, limit=4
    $region2: #{tpu_custom_call.1} parent=1 // loop_pre_header
      _
    $region3: #{tpu_custom_call.1} parent=1 // loop_header
      %s24 = sphi 0, %s28
      %p25 = scmp.ge.s32.totalorder %s24, 4
      %s34 = sphi 0, %s36
      %s37 = sphi 0, %s34
      %s38 = sphi 0, %s37
      %s54 = sphi 0, %s38
      %s60 = sphi 0, %s62
      %s63 = sphi 0, %s60
      %s64 = sphi 0, %s63
      %s80 = sphi 0, %s64
      %s84 = sphi 0, %s84
      %s86 = sphi 0, %s84
      %s87 = sphi 0, %s86
      %s101 = sphi 0, %s87
      %s105 = sphi 0, %s105
      %s107 = sphi 0, %s105
      %s108 = sphi 0, %s107
      %s122 = sphi 0, %s108
      %s126 = sphi 0, %s126
      %s128 = sphi 0, %s126
      %s129 = sphi 0, %s128
      %s143 = sphi 0, %s129
      %s147 = sphi 0, %s147
      %s149 = sphi 0, %s147
      %s150 = sphi 0, %s149
      %s164 = sphi 0, %s150
      %s168 = sphi 0, %s168
      %s170 = sphi 0, %s168
      %s171 = sphi 0, %s170
      %s185 = sphi 0, %s171
      %s189 = sphi 0, %s189
      %s191 = sphi 0, %s189
      %s192 = sphi 0, %s191
      %s206 = sphi 0, %s192
      %s212 = sphi 0, %s214
      %s215 = sphi 0, %s212
      %s216 = sphi 0, %s215
      %s232 = sphi 0, %s216
    $region4: #{tpu_custom_call.1} parent=1 // loop_header_branch
      %27 = sbr.rel (%p25) target = $region8
    $region5: #{tpu_custom_call.1} parent=1 // loop_body
      %s29 = ssub.s32 %s24, 1
      %s30 = ssub.s32 %s24, 2
      %s31 = sadd.s32 %s24, 1
      %s32 = ssub.s32 %s24, %s31
      %p33 = scmp.eq.s32.totalorder %s32, 0
      %s35 = sadd.s32 %s34, 1
      %s36 = scalar_select %p33, %s34, %s35
      %p39 = pneg %p33
      %p40 = scmp.eq.s32.totalorder %s24, 1
      %p41 = por %p39, %p40
      %p42 = scmp.ne.s32.totalorder %s34, %s37
      %p43 = scmp.eq.s32.totalorder %s24, 0
      %p44 = por %p42, %p43
      %p45 = scmp.ne.s32.totalorder %s34, %s37
      %p46 = scmp.eq.s32.totalorder %s29, 1
      %p47 = por %p45, %p46
      %p48 = scmp.ne.s32.totalorder %s37, %s38
      %p49 = scmp.eq.s32.totalorder %s29, 0
      %p50 = por %p48, %p49
      %p51 = scmp.ne.s32.totalorder %s37, %s38
      %p52 = scmp.eq.s32.totalorder %s30, 1
      %p53 = por %p51, %p52
      %p55 = scmp.ne.s32.totalorder %s38, %s54
      %p56 = scmp.eq.s32.totalorder %s30, 0
      %p57 = por %p55, %p56
      %s58 = ssub.s32 %s24, %s31
      %p59 = scmp.eq.s32.totalorder %s58, 0
      %s61 = sadd.s32 %s60, 1
      %s62 = scalar_select %p59, %s60, %s61
      %p65 = pneg %p59
      %p66 = scmp.eq.s32.totalorder %s24, 1
      %p67 = por %p65, %p66
      %p68 = scmp.ne.s32.totalorder %s60, %s63
      %p69 = scmp.eq.s32.totalorder %s24, 0
      %p70 = por %p68, %p69
      %p71 = scmp.ne.s32.totalorder %s60, %s63
      %p72 = scmp.eq.s32.totalorder %s29, 1
      %p73 = por %p71, %p72
      %p74 = scmp.ne.s32.totalorder %s63, %s64
      %p75 = scmp.eq.s32.totalorder %s29, 0
      %p76 = por %p74, %p75
      %p77 = scmp.ne.s32.totalorder %s63, %s64
      %p78 = scmp.eq.s32.totalorder %s30, 1
      %p79 = por %p77, %p78
      %p81 = scmp.ne.s32.totalorder %s64, %s80
      %p82 = scmp.eq.s32.totalorder %s30, 0
      %p83 = por %p81, %p82
      %s85 = sadd.s32 %s84, 1
      %p88 = scmp.eq.s32.totalorder %s24, 1
      %p89 = scmp.ne.s32.totalorder %s84, %s86
      %p90 = scmp.eq.s32.totalorder %s24, 0
      %p91 = por %p89, %p90
      %p92 = scmp.ne.s32.totalorder %s84, %s86
      %p93 = scmp.eq.s32.totalorder %s29, 1
      %p94 = por %p92, %p93
      %p95 = scmp.ne.s32.totalorder %s86, %s87
      %p96 = scmp.eq.s32.totalorder %s29, 0
      %p97 = por %p95, %p96
      %p98 = scmp.ne.s32.totalorder %s86, %s87
      %p99 = scmp.eq.s32.totalorder %s30, 1
      %p100 = por %p98, %p99
      %p102 = scmp.ne.s32.totalorder %s87, %s101
      %p103 = scmp.eq.s32.totalorder %s30, 0
      %p104 = por %p102, %p103
      %s106 = sadd.s32 %s105, 1
      %p109 = scmp.eq.s32.totalorder %s24, 1
      %p110 = scmp.ne.s32.totalorder %s105, %s107
      %p111 = scmp.eq.s32.totalorder %s24, 0
      %p112 = por %p110, %p111
      %p113 = scmp.ne.s32.totalorder %s105, %s107
      %p114 = scmp.eq.s32.totalorder %s29, 1
      %p115 = por %p113, %p114
      %p116 = scmp.ne.s32.totalorder %s107, %s108
      %p117 = scmp.eq.s32.totalorder %s29, 0
      %p118 = por %p116, %p117
      %p119 = scmp.ne.s32.totalorder %s107, %s108
      %p120 = scmp.eq.s32.totalorder %s30, 1
      %p121 = por %p119, %p120
      %p123 = scmp.ne.s32.totalorder %s108, %s122
      %p124 = scmp.eq.s32.totalorder %s30, 0
      %p125 = por %p123, %p124
      %s127 = sadd.s32 %s126, 1
      %p130 = scmp.eq.s32.totalorder %s24, 1
      %p131 = scmp.ne.s32.totalorder %s126, %s128
      %p132 = scmp.eq.s32.totalorder %s24, 0
      %p133 = por %p131, %p132
      %p134 = scmp.ne.s32.totalorder %s126, %s128
      %p135 = scmp.eq.s32.totalorder %s29, 1
      %p136 = por %p134, %p135
      %p137 = scmp.ne.s32.totalorder %s128, %s129
      %p138 = scmp.eq.s32.totalorder %s29, 0
      %p139 = por %p137, %p138
      %p140 = scmp.ne.s32.totalorder %s128, %s129
      %p141 = scmp.eq.s32.totalorder %s30, 1
      %p142 = por %p140, %p141
      %p144 = scmp.ne.s32.totalorder %s129, %s143
      %p145 = scmp.eq.s32.totalorder %s30, 0
      %p146 = por %p144, %p145
      %s148 = sadd.s32 %s147, 1
      %p151 = scmp.eq.s32.totalorder %s24, 1
      %p152 = scmp.ne.s32.totalorder %s147, %s149
      %p153 = scmp.eq.s32.totalorder %s24, 0
      %p154 = por %p152, %p153
      %p155 = scmp.ne.s32.totalorder %s147, %s149
      %p156 = scmp.eq.s32.totalorder %s29, 1
      %p157 = por %p155, %p156
      %p158 = scmp.ne.s32.totalorder %s149, %s150
      %p159 = scmp.eq.s32.totalorder %s29, 0
      %p160 = por %p158, %p159
      %p161 = scmp.ne.s32.totalorder %s149, %s150
      %p162 = scmp.eq.s32.totalorder %s30, 1
      %p163 = por %p161, %p162
      %p165 = scmp.ne.s32.totalorder %s150, %s164
      %p166 = scmp.eq.s32.totalorder %s30, 0
      %p167 = por %p165, %p166
      %s169 = sadd.s32 %s168, 1
      %p172 = scmp.eq.s32.totalorder %s24, 1
      %p173 = scmp.ne.s32.totalorder %s168, %s170
      %p174 = scmp.eq.s32.totalorder %s24, 0
      %p175 = por %p173, %p174
      %p176 = scmp.ne.s32.totalorder %s168, %s170
      %p177 = scmp.eq.s32.totalorder %s29, 1
      %p178 = por %p176, %p177
      %p179 = scmp.ne.s32.totalorder %s170, %s171
      %p180 = scmp.eq.s32.totalorder %s29, 0
      %p181 = por %p179, %p180
      %p182 = scmp.ne.s32.totalorder %s170, %s171
      %p183 = scmp.eq.s32.totalorder %s30, 1
      %p184 = por %p182, %p183
      %p186 = scmp.ne.s32.totalorder %s171, %s185
      %p187 = scmp.eq.s32.totalorder %s30, 0
      %p188 = por %p186, %p187
      %s190 = sadd.s32 %s189, 1
      %p193 = scmp.eq.s32.totalorder %s24, 1
      %p194 = scmp.ne.s32.totalorder %s189, %s191
      %p195 = scmp.eq.s32.totalorder %s24, 0
      %p196 = por %p194, %p195
      %p197 = scmp.ne.s32.totalorder %s189, %s191
      %p198 = scmp.eq.s32.totalorder %s29, 1
      %p199 = por %p197, %p198
      %p200 = scmp.ne.s32.totalorder %s191, %s192
      %p201 = scmp.eq.s32.totalorder %s29, 0
      %p202 = por %p200, %p201
      %p203 = scmp.ne.s32.totalorder %s191, %s192
      %p204 = scmp.eq.s32.totalorder %s30, 1
      %p205 = por %p203, %p204
      %p207 = scmp.ne.s32.totalorder %s192, %s206
      %p208 = scmp.eq.s32.totalorder %s30, 0
      %p209 = por %p207, %p208
      %s210 = ssub.s32 %s24, %s31
      %p211 = scmp.eq.s32.totalorder %s210, 0
      %s213 = sadd.s32 %s212, 1
      %s214 = scalar_select %p211, %s212, %s213
      %p217 = pneg %p211
      %p218 = scmp.eq.s32.totalorder %s24, 1
      %p219 = por %p217, %p218
      %p220 = scmp.ne.s32.totalorder %s212, %s215
      %p221 = scmp.eq.s32.totalorder %s24, 0
      %p222 = por %p220, %p221
      %p223 = scmp.ne.s32.totalorder %s212, %s215
      %p224 = scmp.eq.s32.totalorder %s29, 1
      %p225 = por %p223, %p224
      %p226 = scmp.ne.s32.totalorder %s215, %s216
      %p227 = scmp.eq.s32.totalorder %s29, 0
      %p228 = por %p226, %p227
      %p229 = scmp.ne.s32.totalorder %s215, %s216
      %p230 = scmp.eq.s32.totalorder %s30, 1
      %p231 = por %p229, %p230
      %p233 = scmp.ne.s32.totalorder %s216, %s232
      %p234 = scmp.eq.s32.totalorder %s30, 0
      %p235 = por %p233, %p234
      %p236 = scmp.le.s32.totalorder 1, %s24
      %p237 = scmp.lt.s32.totalorder %s24, 3
      %p238 = pnand %p236, %p237
      %p239 = pneg %p238
      // Predicated region
      $region9: #{tpu_custom_call.1} parent=5 // pred_check
        _
      $region10: #{tpu_custom_call.1} parent=5 // pred_check_branch
        %241 = sbr.rel (%p238) target = $region12
      $region11: #{tpu_custom_call.1} parent=5 // pred_region
        %s242 = ssub.s32 %s24, 1
        // Predicated region
        $region13: #{tpu_custom_call.1} parent=11 // pred_check
          %p243 = pneg %p97
        $region14: #{tpu_custom_call.1} parent=11 // pred_check_branch
          %245 = sbr.rel (%p243) target = $region16
        $region15: #{tpu_custom_call.1} parent=11 // pred_region
          %s247 = ssub.s32 512, 512
          %248 = vsyncadd [#allocation6], %s247
          %s249 = sshll.u32 [#allocation7], 4
          %s250 = int_to_ptr.vmem [resolvable:$true] %s249
          %255 = dma.hbm_to_vmem [thread:$0]  %s2, 512, %s250, [#allocation6], 128, 128, 8
        $region16: #{tpu_custom_call.1} parent=11 // pred_fallthru
          _
        // Predicated region
        $region17: #{tpu_custom_call.1} parent=11 // pred_check
          %p256 = pneg %p118
        $region18: #{tpu_custom_call.1} parent=11 // pred_check_branch
          %258 = sbr.rel (%p256) target = $region20
        $region19: #{tpu_custom_call.1} parent=11 // pred_region
          _
        $region20: #{tpu_custom_call.1} parent=11 // pred_fallthru
          _
        // Predicated region
        $region21: #{tpu_custom_call.1} parent=11 // pred_check
          %p259 = pneg %p139
        $region22: #{tpu_custom_call.1} parent=11 // pred_check_branch
          %261 = sbr.rel (%p259) target = $region24
        $region23: #{tpu_custom_call.1} parent=11 // pred_region
          %s263 = ssub.s32 512, 512
          %264 = vsyncadd [#allocation9], %s263
          %s265 = sshll.u32 [#allocation8], 4
          %s266 = int_to_ptr.vmem [resolvable:$true] %s265
          %271 = dma.hbm_to_vmem [thread:$0]  %s4, 512, %s266, [#allocation9], 128, 128, 8
        $region24: #{tpu_custom_call.1} parent=11 // pred_fallthru
          _
        // Predicated region
        $region25: #{tpu_custom_call.1} parent=11 // pred_check
          %p272 = pneg %p160
        $region26: #{tpu_custom_call.1} parent=11 // pred_check_branch
          %274 = sbr.rel (%p272) target = $region28
        $region27: #{tpu_custom_call.1} parent=11 // pred_region
          _
        $region28: #{tpu_custom_call.1} parent=11 // pred_fallthru
          _
        // Predicated region
        $region29: #{tpu_custom_call.1} parent=11 // pred_check
          %p275 = pneg %p181
        $region30: #{tpu_custom_call.1} parent=11 // pred_check_branch
          %277 = sbr.rel (%p275) target = $region32
        $region31: #{tpu_custom_call.1} parent=11 // pred_region
          %s279 = ssub.s32 512, 512
          %280 = vsyncadd [#allocation9], %s279
          %s281 = sshll.u32 [#allocation10], 4
          %s282 = int_to_ptr.vmem [resolvable:$true] %s281
          %287 = dma.hbm_to_vmem [thread:$0]  %s6, 512, %s282, [#allocation9], 128, 128, 8
        $region32: #{tpu_custom_call.1} parent=11 // pred_fallthru
          _
        // Predicated region
        $region33: #{tpu_custom_call.1} parent=11 // pred_check
          %p288 = pneg %p202
        $region34: #{tpu_custom_call.1} parent=11 // pred_check_branch
          %290 = sbr.rel (%p288) target = $region36
        $region35: #{tpu_custom_call.1} parent=11 // pred_region
          _
        $region36: #{tpu_custom_call.1} parent=11 // pred_fallthru
          _
      $region12: #{tpu_custom_call.1} parent=5 // pred_fallthru
        _
      %p291 = scmp.lt.s32.totalorder %s24, 2
      // Predicated region
      $region37: #{tpu_custom_call.1} parent=5 // pred_check
        %p292 = pneg %p291
      $region38: #{tpu_custom_call.1} parent=5 // pred_check_branch
        %294 = sbr.rel (%p292) target = $region40
      $region39: #{tpu_custom_call.1} parent=5 // pred_region
        // Predicated region
        $region41: #{tpu_custom_call.1} parent=39 // pred_check
          %p295 = pneg %p44
        $region42: #{tpu_custom_call.1} parent=39 // pred_check_branch
          %297 = sbr.rel (%p295) target = $region44
        $region43: #{tpu_custom_call.1} parent=39 // pred_region
          %s298 = sand.u32 %s34, 1
          %s299 = scalar_lea.sflag [#allocation3], %s298
          %s300 = sand.u32 %s34, 1
          %s301 = smul.addr %s300, 8
          %s302 = scalar_lea.vmem [#allocation2], %s301
          %s304 = ssub.s32 128, 128
          %305 = vsyncadd %s299, %s304
          %s306 = smul.addr %s24, 128
          %s307 = scalar_lea.hbm %s0, %s306
          %s309 = sshll.u32 %s302, 4
          %s310 = int_to_ptr.vmem [resolvable:$true] %s309
          %312 = dma.hbm_to_vmem [thread:$0]  %s307, 128, %s310, %s299
        $region44: #{tpu_custom_call.1} parent=39 // pred_fallthru
          _
        // Predicated region
        $region45: #{tpu_custom_call.1} parent=39 // pred_check
          %p313 = pneg %p70
        $region46: #{tpu_custom_call.1} parent=39 // pred_check_branch
          %315 = sbr.rel (%p313) target = $region48
        $region47: #{tpu_custom_call.1} parent=39 // pred_region
          %s316 = sand.u32 %s24, 1
          %s317 = scalar_lea.sflag [#allocation6], %s316
          %s318 = sand.u32 %s60, 1
          %s319 = smul.addr %s318, 8
          %s320 = scalar_lea.vmem [#allocation5], %s319
          %s322 = ssub.s32 128, 128
          %323 = vsyncadd %s317, %s322
          %s324 = smul.addr %s24, 128
          %s325 = scalar_lea.hbm %s1, %s324
          %s327 = sshll.u32 %s320, 4
          %s328 = int_to_ptr.vmem [resolvable:$true] %s327
          %330 = dma.hbm_to_vmem [thread:$0]  %s325, 128, %s328, %s317
        $region48: #{tpu_custom_call.1} parent=39 // pred_fallthru
          _
      $region40: #{tpu_custom_call.1} parent=5 // pred_fallthru
        _
      %p331 = scmp.le.s32.totalorder 1, %s24
      %p332 = scmp.lt.s32.totalorder %s24, 3
      %p333 = pnand %p331, %p332
      %p334 = pneg %p333
      // Predicated region
      $region49: #{tpu_custom_call.1} parent=5 // pred_check
        _
      $region50: #{tpu_custom_call.1} parent=5 // pred_check_branch
        %336 = sbr.rel (%p333) target = $region52
      $region51: #{tpu_custom_call.1} parent=5 // pred_region
        %s337 = ssub.s32 %s24, 1
        %s338 = sand.u32 %s37, 1
        %s339 = scalar_lea.sflag [#allocation3], %s338
        %s340 = sand.u32 %s37, 1
        %s341 = smul.addr %s340, 8
        %s342 = scalar_lea.vmem [#allocation2], %s341
        // Predicated region
        $region53: #{tpu_custom_call.1} parent=51 // pred_check
          %p343 = pneg %p50
        $region54: #{tpu_custom_call.1} parent=51 // pred_check_branch
          %345 = sbr.rel (%p343) target = $region56
        $region55: #{tpu_custom_call.1} parent=51 // pred_region
          %346 = dma.done %s339, 128
        $region56: #{tpu_custom_call.1} parent=51 // pred_fallthru
          _
        %s347 = sand.u32 %s29, 1
        %s348 = scalar_lea.sflag [#allocation6], %s347
        %s349 = sand.u32 %s63, 1
        %s350 = smul.addr %s349, 8
        %s351 = scalar_lea.vmem [#allocation5], %s350
        // Predicated region
        $region57: #{tpu_custom_call.1} parent=51 // pred_check
          %p352 = pneg %p76
        $region58: #{tpu_custom_call.1} parent=51 // pred_check_branch
          %354 = sbr.rel (%p352) target = $region60
        $region59: #{tpu_custom_call.1} parent=51 // pred_region
          %355 = dma.done %s348, 128
        $region60: #{tpu_custom_call.1} parent=51 // pred_fallthru
          _
        // Predicated region
        $region61: #{tpu_custom_call.1} parent=51 // pred_check
          %p356 = pneg %p97
        $region62: #{tpu_custom_call.1} parent=51 // pred_check_branch
          %358 = sbr.rel (%p356) target = $region64
        $region63: #{tpu_custom_call.1} parent=51 // pred_region
          %359 = dma.done [#allocation6], 512
        $region64: #{tpu_custom_call.1} parent=51 // pred_fallthru
          _
        // Predicated region
        $region65: #{tpu_custom_call.1} parent=51 // pred_check
          %p360 = pneg %p139
        $region66: #{tpu_custom_call.1} parent=51 // pred_check_branch
          %362 = sbr.rel (%p360) target = $region68
        $region67: #{tpu_custom_call.1} parent=51 // pred_region
          %363 = dma.done [#allocation9], 512
        $region68: #{tpu_custom_call.1} parent=51 // pred_fallthru
          _
        // Predicated region
        $region69: #{tpu_custom_call.1} parent=51 // pred_check
          %p364 = pneg %p181
        $region70: #{tpu_custom_call.1} parent=51 // pred_check_branch
          %366 = sbr.rel (%p364) target = $region72
        $region71: #{tpu_custom_call.1} parent=51 // pred_region
          %367 = dma.done [#allocation9], 512
        $region72: #{tpu_custom_call.1} parent=51 // pred_fallthru
          _
        %s368 = sand.u32 %s37, 1
        %s369 = scalar_lea.sflag [#allocation3], %s368
        %s370 = sand.u32 %s37, 1
        %s371 = smul.addr %s370, 8
        %s372 = scalar_lea.vmem [#allocation2], %s371
        %p373 = pneg %p50
        %p374 = pneg %p47
        %s375 = sand.u32 %s29, 1
        %s376 = scalar_lea.sflag [#allocation6], %s375
        %s377 = sand.u32 %s63, 1
        %s378 = smul.addr %s377, 8
        %s379 = scalar_lea.vmem [#allocation5], %s378
        %p380 = pneg %p76
        %p381 = pneg %p73
        %p382 = pneg %p97
        %p383 = pneg %p94
        %p384 = pneg %p118
        %p385 = pneg %p115
        %p386 = pneg %p139
        %p387 = pneg %p136
        %p388 = pneg %p160
        %p389 = pneg %p157
        %p390 = pneg %p181
        %p391 = pneg %p178
        %p392 = pneg %p202
        %p393 = pneg %p199
        %p394 = pneg %p228
        %p395 = pneg %p225
        %s396 = sand.u32 %s215, 1
        %s397 = scalar_lea.sflag [#allocation4], %s396
        %s398 = sand.u32 %s215, 1
        %s399 = smul.addr %s398, 8
        %s400 = scalar_lea.vmem [#allocation11], %s399
        %v401 = vld [vmem:[%s342] sm:$0xff]
        %v402 = vld [vmem:[%s351] sm:$0xff]
        %v403 = vld [vmem:[#allocation7] sm:$0xff]
        %v404 = vld [vmem:[#allocation7 + $0x8] sm:$0xff]
        %v405 = vld [vmem:[#allocation7 + $0x10] sm:$0xff]
        %v406 = vld [vmem:[#allocation7 + $0x18] sm:$0xff]
        %v407 = vld [vmem:[%s3] sm:$0x1]
        %v409 = vlaneseq
        %v410 = vshrl.u32 %v409, 7
        %v411 = vsub.s32 0, %v410
        %v412 = vrot.slane %v407, %v411
        %vm414 = vcmask 261120
        %v416 = vsel %vm414, %v401, 0
        %418 = vmatprep.subr.mxu0 0.0
        %419 = vmatpush1.msra.mxu0 %v403
        %420 = vmatprep.subr.mxu0 0.0
        %421 = vmatpush1.msra.mxu0 %v404
        %422 = vmatprep.subr.mxu0 0.0
        %423 = vmatpush1.msra.mxu0 %v405
        %424 = vmatprep.subr.mxu0 0.0
        %425 = vmatpush1.msra.mxu0 %v406
        %426 = vmatprep.subr.mxu0 0.0
        %427 = vmatpush1.msra.mxu0 0.0
        %428 = vmatprep.subr.mxu0 0.0
        %429 = vmatpush1.msra.mxu0 0.0
        %430 = vmatprep.subr.mxu0 0.0
        %431 = vmatpush1.msra.mxu0 0.0
        %432 = vmatprep.subr.mxu0 0.0
        %433 = vmatpush1.msra.mxu0 0.0
        %434 = vmatprep.subr.mxu0 0.0
        %435 = vmatpush1.msra.mxu0 0.0
        %436 = vmatprep.subr.mxu0 0.0
        %437 = vmatpush1.msra.mxu0 0.0
        %438 = vmatprep.subr.mxu0 0.0
        %439 = vmatpush1.msra.mxu0 0.0
        %440 = vmatprep.subr.mxu0 0.0
        %441 = vmatpush1.msra.mxu0 0.0
        %442 = vmatprep.subr.mxu0 0.0
        %443 = vmatpush1.msra.mxu0 0.0
        %444 = vmatprep.subr.mxu0 0.0
        %445 = vmatpush1.msra.mxu0 0.0
        %446 = vmatprep.subr.mxu0 0.0
        %447 = vmatpush1.msra.mxu0 0.0
        %448 = vmatprep.subr.mxu0 0.0
        %449 = vmatpush1.msra.mxu0 0.0
        %450 = vmatprep.subr.mxu0 0.0
        %451 = vmatpush1.msra.mxu0 0.0
        %452 = vmatprep.subr.mxu0 0.0
        %453 = vmatpush1.msra.mxu0 0.0
        %454 = vmatprep.subr.mxu0 0.0
        %455 = vmatpush1.msra.mxu0 0.0
        %456 = vmatprep.subr.mxu0 0.0
        %457 = vmatpush1.msra.mxu0 0.0
        %458 = vmatprep.subr.mxu0 0.0
        %459 = vmatpush1.msra.mxu0 0.0
        %460 = vmatprep.subr.mxu0 0.0
        %461 = vmatpush1.msra.mxu0 0.0
        %462 = vmatprep.subr.mxu0 0.0
        %463 = vmatpush1.msra.mxu0 0.0
        %464 = vmatprep.subr.mxu0 0.0
        %465 = vmatpush1.msra.mxu0 0.0
        %466 = vmatprep.subr.mxu0 0.0
        %467 = vmatpush1.msra.mxu0 0.0
        %468 = vmatprep.subr.mxu0 0.0
        %469 = vmatpush1.msra.mxu0 0.0
        %470 = vmatprep.subr.mxu0 0.0
        %471 = vmatpush1.msra.mxu0 0.0
        %472 = vmatprep.subr.mxu0 0.0
        %473 = vmatpush1.msra.mxu0 0.0
        %474 = vmatprep.subr.mxu0 0.0
        %475 = vmatpush1.msra.mxu0 0.0
        %476 = vmatprep.subr.mxu0 0.0
        %477 = vmatpush1.msra.mxu0 0.0
        %478 = vmatprep.subr.mxu0 0.0
        %479 = vmatpush1.msra.mxu0 0.0
        %480 = vmatprep.subr.mxu0 0.0
        %481 = vmatpush1.msra.mxu0 0.0
        %482 = vmatprep.mubr.f32.mxu0 0.0
        %483 = vmatmul.mubr.f32.gmra.mrb[0].mxu0 %v416
        %v484 = vpop.f32.mrb[0].mxu0
        %v485 = vadd.f32 %v412, %v484
        %v486 = vpop.f32.mrb[0].mxu0
        %487 = vdwg.mxu0
        %v488 = vld [vmem:[#allocation8] sm:$0xff]
        %v489 = vld [vmem:[#allocation8 + $0x8] sm:$0xff]
        %v490 = vld [vmem:[#allocation8 + $0x10] sm:$0xff]
        %v491 = vld [vmem:[#allocation8 + $0x18] sm:$0xff]
        %v492 = vld [vmem:[%s5] sm:$0x1]
        %v494 = vlaneseq
        %v495 = vshrl.u32 %v494, 7
        %v496 = vsub.s32 0, %v495
        %v497 = vrot.slane %v492, %v496
        %v500 = vsel %vm414, %v402, 0
        %502 = vmatprep.subr.mxu0 0.0
        %503 = vmatpush1.msra.mxu0 %v488
        %504 = vmatprep.subr.mxu0 0.0
        %505 = vmatpush1.msra.mxu0 %v489
        %506 = vmatprep.subr.mxu0 0.0
        %507 = vmatpush1.msra.mxu0 %v490
        %508 = vmatprep.subr.mxu0 0.0
        %509 = vmatpush1.msra.mxu0 %v491
        %510 = vmatprep.subr.mxu0 0.0
        %511 = vmatpush1.msra.mxu0 0.0
        %512 = vmatprep.subr.mxu0 0.0
        %513 = vmatpush1.msra.mxu0 0.0
        %514 = vmatprep.subr.mxu0 0.0
        %515 = vmatpush1.msra.mxu0 0.0
        %516 = vmatprep.subr.mxu0 0.0
        %517 = vmatpush1.msra.mxu0 0.0
        %518 = vmatprep.subr.mxu0 0.0
        %519 = vmatpush1.msra.mxu0 0.0
        %520 = vmatprep.subr.mxu0 0.0
        %521 = vmatpush1.msra.mxu0 0.0
        %522 = vmatprep.subr.mxu0 0.0
        %523 = vmatpush1.msra.mxu0 0.0
        %524 = vmatprep.subr.mxu0 0.0
        %525 = vmatpush1.msra.mxu0 0.0
        %526 = vmatprep.subr.mxu0 0.0
        %527 = vmatpush1.msra.mxu0 0.0
        %528 = vmatprep.subr.mxu0 0.0
        %529 = vmatpush1.msra.mxu0 0.0
        %530 = vmatprep.subr.mxu0 0.0
        %531 = vmatpush1.msra.mxu0 0.0
        %532 = vmatprep.subr.mxu0 0.0
        %533 = vmatpush1.msra.mxu0 0.0
        %534 = vmatprep.subr.mxu0 0.0
        %535 = vmatpush1.msra.mxu0 0.0
        %536 = vmatprep.subr.mxu0 0.0
        %537 = vmatpush1.msra.mxu0 0.0
        %538 = vmatprep.subr.mxu0 0.0
        %539 = vmatpush1.msra.mxu0 0.0
        %540 = vmatprep.subr.mxu0 0.0
        %541 = vmatpush1.msra.mxu0 0.0
        %542 = vmatprep.subr.mxu0 0.0
        %543 = vmatpush1.msra.mxu0 0.0
        %544 = vmatprep.subr.mxu0 0.0
        %545 = vmatpush1.msra.mxu0 0.0
        %546 = vmatprep.subr.mxu0 0.0
        %547 = vmatpush1.msra.mxu0 0.0
        %548 = vmatprep.subr.mxu0 0.0
        %549 = vmatpush1.msra.mxu0 0.0
        %550 = vmatprep.subr.mxu0 0.0
        %551 = vmatpush1.msra.mxu0 0.0
        %552 = vmatprep.subr.mxu0 0.0
        %553 = vmatpush1.msra.mxu0 0.0
        %554 = vmatprep.subr.mxu0 0.0
        %555 = vmatpush1.msra.mxu0 0.0
        %556 = vmatprep.subr.mxu0 0.0
        %557 = vmatpush1.msra.mxu0 0.0
        %558 = vmatprep.subr.mxu0 0.0
        %559 = vmatpush1.msra.mxu0 0.0
        %560 = vmatprep.subr.mxu0 0.0
        %561 = vmatpush1.msra.mxu0 0.0
        %562 = vmatprep.subr.mxu0 0.0
        %563 = vmatpush1.msra.mxu0 0.0
        %564 = vmatprep.subr.mxu0 0.0
        %565 = vmatpush1.msra.mxu0 0.0
        %566 = vmatprep.mubr.f32.mxu0 0.0
        %567 = vmatmul.mubr.f32.gmra.mrb[0].mxu0 %v500
        %v568 = vpop.f32.mrb[0].mxu0
        %v569 = vadd.f32 %v497, %v568
        %v570 = vpop.f32.mrb[0].mxu0
        %571 = vdwg.mxu0
        %vm572 = vcmask 31744
        %v574 = vsel %vm572, %v485, 0
        %v577 = vsel %vm572, %v569, 0
        %579 = vmatprep.subr.mxu0 0.0
        %580 = vmatpush1.xpose.msra.mxu0 %v577
        %581 = vmatprep.subr.mxu0 0.0
        %582 = vmatpush1.xpose.msra.mxu0 0.0
        %583 = vmatprep.subr.mxu0 0.0
        %584 = vmatpush1.xpose.msra.mxu0 0.0
        %585 = vmatprep.subr.mxu0 0.0
        %586 = vmatpush1.xpose.msra.mxu0 0.0
        %587 = vmatprep.subr.mxu0 0.0
        %588 = vmatpush1.xpose.msra.mxu0 0.0
        %589 = vmatprep.subr.mxu0 0.0
        %590 = vmatpush1.xpose.msra.mxu0 0.0
        %591 = vmatprep.subr.mxu0 0.0
        %592 = vmatpush1.xpose.msra.mxu0 0.0
        %593 = vmatprep.subr.mxu0 0.0
        %594 = vmatpush1.xpose.msra.mxu0 0.0
        %595 = vmatprep.subr.mxu0 0.0
        %596 = vmatpush1.xpose.msra.mxu0 0.0
        %597 = vmatprep.subr.mxu0 0.0
        %598 = vmatpush1.xpose.msra.mxu0 0.0
        %599 = vmatprep.subr.mxu0 0.0
        %600 = vmatpush1.xpose.msra.mxu0 0.0
        %601 = vmatprep.subr.mxu0 0.0
        %602 = vmatpush1.xpose.msra.mxu0 0.0
        %603 = vmatprep.subr.mxu0 0.0
        %604 = vmatpush1.xpose.msra.mxu0 0.0
        %605 = vmatprep.subr.mxu0 0.0
        %606 = vmatpush1.xpose.msra.mxu0 0.0
        %607 = vmatprep.subr.mxu0 0.0
        %608 = vmatpush1.xpose.msra.mxu0 0.0
        %609 = vmatprep.subr.mxu0 0.0
        %610 = vmatpush1.xpose.msra.mxu0 0.0
        %611 = vmatprep.subr.mxu0 0.0
        %612 = vmatpush1.xpose.msra.mxu0 0.0
        %613 = vmatprep.subr.mxu0 0.0
        %614 = vmatpush1.xpose.msra.mxu0 0.0
        %615 = vmatprep.subr.mxu0 0.0
        %616 = vmatpush1.xpose.msra.mxu0 0.0
        %617 = vmatprep.subr.mxu0 0.0
        %618 = vmatpush1.xpose.msra.mxu0 0.0
        %619 = vmatprep.subr.mxu0 0.0
        %620 = vmatpush1.xpose.msra.mxu0 0.0
        %621 = vmatprep.subr.mxu0 0.0
        %622 = vmatpush1.xpose.msra.mxu0 0.0
        %623 = vmatprep.subr.mxu0 0.0
        %624 = vmatpush1.xpose.msra.mxu0 0.0
        %625 = vmatprep.subr.mxu0 0.0
        %626 = vmatpush1.xpose.msra.mxu0 0.0
        %627 = vmatprep.subr.mxu0 0.0
        %628 = vmatpush1.xpose.msra.mxu0 0.0
        %629 = vmatprep.subr.mxu0 0.0
        %630 = vmatpush1.xpose.msra.mxu0 0.0
        %631 = vmatprep.subr.mxu0 0.0
        %632 = vmatpush1.xpose.msra.mxu0 0.0
        %633 = vmatprep.subr.mxu0 0.0
        %634 = vmatpush1.xpose.msra.mxu0 0.0
        %635 = vmatprep.subr.mxu0 0.0
        %636 = vmatpush1.xpose.msra.mxu0 0.0
        %637 = vmatprep.subr.mxu0 0.0
        %638 = vmatpush1.xpose.msra.mxu0 0.0
        %639 = vmatprep.subr.mxu0 0.0
        %640 = vmatpush1.xpose.msra.mxu0 0.0
        %641 = vmatprep.subr.mxu0 0.0
        %642 = vmatpush1.xpose.msra.mxu0 0.0
        %643 = vmatprep.mubr.f32.mxu0 0.0
        %644 = vmatmul.mubr.f32.gmra.mrb[0].mxu0 %v574
        %v645 = vpop.f32.mrb[0].mxu0
        %v646 = vadd.f32 0.0, %v645
        %v647 = vpop.f32.mrb[0].mxu0
        %648 = vdwg.mxu0
        %vm649 = vcmask 64512
        %v650 = vsel %vm649, %v646, -inf
        %651 = vmax.xlane.f32.xlu0 %v650
        %v652 = vpop.xlane.xlu0 %651
        %v653 = vsub.f32 %v646, %v652
        %v654 = vmul.f32 %v653, 1.442695
        %v655 = vpow.pop %v654
        %v656 = vsel %vm649, %v655, 0.0
        %657 = vadd.xlane.f32.xlu0 %v656
        %v658 = vpop.xlane.xlu0 %657
        %v659 = vrcp.pop %v658
        %v660 = vmul.f32 %v655, %v659
        %661 = vrot.lane.b32.xlu0 %v569, 96
        %v662 = vpop.permute.xlu0 %661
        %v665 = vsel %vm649, %v660, 0
        %667 = vmatprep.subr.mxu0 0.0
        %668 = vmatpush1.msra.mxu0 %v662
        %669 = vmatprep.subr.mxu0 0.0
        %670 = vmatpush1.msra.mxu0 0.0
        %671 = vmatprep.subr.mxu0 0.0
        %672 = vmatpush1.msra.mxu0 0.0
        %673 = vmatprep.subr.mxu0 0.0
        %674 = vmatpush1.msra.mxu0 0.0
        %675 = vmatprep.subr.mxu0 0.0
        %676 = vmatpush1.msra.mxu0 0.0
        %677 = vmatprep.subr.mxu0 0.0
        %678 = vmatpush1.msra.mxu0 0.0
        %679 = vmatprep.subr.mxu0 0.0
        %680 = vmatpush1.msra.mxu0 0.0
        %681 = vmatprep.subr.mxu0 0.0
        %682 = vmatpush1.msra.mxu0 0.0
        %683 = vmatprep.subr.mxu0 0.0
        %684 = vmatpush1.msra.mxu0 0.0
        %685 = vmatprep.subr.mxu0 0.0
        %686 = vmatpush1.msra.mxu0 0.0
        %687 = vmatprep.subr.mxu0 0.0
        %688 = vmatpush1.msra.mxu0 0.0
        %689 = vmatprep.subr.mxu0 0.0
        %690 = vmatpush1.msra.mxu0 0.0
        %691 = vmatprep.subr.mxu0 0.0
        %692 = vmatpush1.msra.mxu0 0.0
        %693 = vmatprep.subr.mxu0 0.0
        %694 = vmatpush1.msra.mxu0 0.0
        %695 = vmatprep.subr.mxu0 0.0
        %696 = vmatpush1.msra.mxu0 0.0
        %697 = vmatprep.subr.mxu0 0.0
        %698 = vmatpush1.msra.mxu0 0.0
        %699 = vmatprep.subr.mxu0 0.0
        %700 = vmatpush1.msra.mxu0 0.0
        %701 = vmatprep.subr.mxu0 0.0
        %702 = vmatpush1.msra.mxu0 0.0
        %703 = vmatprep.subr.mxu0 0.0
        %704 = vmatpush1.msra.mxu0 0.0
        %705 = vmatprep.subr.mxu0 0.0
        %706 = vmatpush1.msra.mxu0 0.0
        %707 = vmatprep.subr.mxu0 0.0
        %708 = vmatpush1.msra.mxu0 0.0
        %709 = vmatprep.subr.mxu0 0.0
        %710 = vmatpush1.msra.mxu0 0.0
        %711 = vmatprep.subr.mxu0 0.0
        %712 = vmatpush1.msra.mxu0 0.0
        %713 = vmatprep.subr.mxu0 0.0
        %714 = vmatpush1.msra.mxu0 0.0
        %715 = vmatprep.subr.mxu0 0.0
        %716 = vmatpush1.msra.mxu0 0.0
        %717 = vmatprep.subr.mxu0 0.0
        %718 = vmatpush1.msra.mxu0 0.0
        %719 = vmatprep.subr.mxu0 0.0
        %720 = vmatpush1.msra.mxu0 0.0
        %721 = vmatprep.subr.mxu0 0.0
        %722 = vmatpush1.msra.mxu0 0.0
        %723 = vmatprep.subr.mxu0 0.0
        %724 = vmatpush1.msra.mxu0 0.0
        %725 = vmatprep.subr.mxu0 0.0
        %726 = vmatpush1.msra.mxu0 0.0
        %727 = vmatprep.subr.mxu0 0.0
        %728 = vmatpush1.msra.mxu0 0.0
        %729 = vmatprep.subr.mxu0 0.0
        %730 = vmatpush1.msra.mxu0 0.0
        %731 = vmatprep.mubr.f32.mxu0 0.0
        %732 = vmatmul.mubr.f32.gmra.mrb[0].mxu0 %v665
        %v733 = vpop.f32.mrb[0].mxu0
        %v734 = vadd.f32 0.0, %v733
        %v735 = vpop.f32.mrb[0].mxu0
        %736 = vdwg.mxu0
        %737 = vrot.lane.b32.xlu0 %v485, 124
        %v738 = vpop.permute.xlu0 %737
        %739 = vrot.lane.b32.xlu0 %v569, 124
        %v740 = vpop.permute.xlu0 %739
        %v741 = vsel %vm572, %v738, 0
        %v743 = vsel %vm572, %v740, 0
        %745 = vmatprep.subr.mxu0 0.0
        %746 = vmatpush1.xpose.msra.mxu0 %v743
        %747 = vmatprep.subr.mxu0 0.0
        %748 = vmatpush1.xpose.msra.mxu0 0.0
        %749 = vmatprep.subr.mxu0 0.0
        %750 = vmatpush1.xpose.msra.mxu0 0.0
        %751 = vmatprep.subr.mxu0 0.0
        %752 = vmatpush1.xpose.msra.mxu0 0.0
        %753 = vmatprep.subr.mxu0 0.0
        %754 = vmatpush1.xpose.msra.mxu0 0.0
        %755 = vmatprep.subr.mxu0 0.0
        %756 = vmatpush1.xpose.msra.mxu0 0.0
        %757 = vmatprep.subr.mxu0 0.0
        %758 = vmatpush1.xpose.msra.mxu0 0.0
        %759 = vmatprep.subr.mxu0 0.0
        %760 = vmatpush1.xpose.msra.mxu0 0.0
        %761 = vmatprep.subr.mxu0 0.0
        %762 = vmatpush1.xpose.msra.mxu0 0.0
        %763 = vmatprep.subr.mxu0 0.0
        %764 = vmatpush1.xpose.msra.mxu0 0.0
        %765 = vmatprep.subr.mxu0 0.0
        %766 = vmatpush1.xpose.msra.mxu0 0.0
        %767 = vmatprep.subr.mxu0 0.0
        %768 = vmatpush1.xpose.msra.mxu0 0.0
        %769 = vmatprep.subr.mxu0 0.0
        %770 = vmatpush1.xpose.msra.mxu0 0.0
        %771 = vmatprep.subr.mxu0 0.0
        %772 = vmatpush1.xpose.msra.mxu0 0.0
        %773 = vmatprep.subr.mxu0 0.0
        %774 = vmatpush1.xpose.msra.mxu0 0.0
        %775 = vmatprep.subr.mxu0 0.0
        %776 = vmatpush1.xpose.msra.mxu0 0.0
        %777 = vmatprep.subr.mxu0 0.0
        %778 = vmatpush1.xpose.msra.mxu0 0.0
        %779 = vmatprep.subr.mxu0 0.0
        %780 = vmatpush1.xpose.msra.mxu0 0.0
        %781 = vmatprep.subr.mxu0 0.0
        %782 = vmatpush1.xpose.msra.mxu0 0.0
        %783 = vmatprep.subr.mxu0 0.0
        %784 = vmatpush1.xpose.msra.mxu0 0.0
        %785 = vmatprep.subr.mxu0 0.0
        %786 = vmatpush1.xpose.msra.mxu0 0.0
        %787 = vmatprep.subr.mxu0 0.0
        %788 = vmatpush1.xpose.msra.mxu0 0.0
        %789 = vmatprep.subr.mxu0 0.0
        %790 = vmatpush1.xpose.msra.mxu0 0.0
        %791 = vmatprep.subr.mxu0 0.0
        %792 = vmatpush1.xpose.msra.mxu0 0.0
        %793 = vmatprep.subr.mxu0 0.0
        %794 = vmatpush1.xpose.msra.mxu0 0.0
        %795 = vmatprep.subr.mxu0 0.0
        %796 = vmatpush1.xpose.msra.mxu0 0.0
        %797 = vmatprep.subr.mxu0 0.0
        %798 = vmatpush1.xpose.msra.mxu0 0.0
        %799 = vmatprep.subr.mxu0 0.0
        %800 = vmatpush1.xpose.msra.mxu0 0.0
        %801 = vmatprep.subr.mxu0 0.0
        %802 = vmatpush1.xpose.msra.mxu0 0.0
        %803 = vmatprep.subr.mxu0 0.0
        %804 = vmatpush1.xpose.msra.mxu0 0.0
        %805 = vmatprep.subr.mxu0 0.0
        %806 = vmatpush1.xpose.msra.mxu0 0.0
        %807 = vmatprep.subr.mxu0 0.0
        %808 = vmatpush1.xpose.msra.mxu0 0.0
        %809 = vmatprep.mubr.f32.mxu0 0.0
        %810 = vmatmul.mubr.f32.gmra.mrb[0].mxu0 %v741
        %v811 = vpop.f32.mrb[0].mxu0
        %v812 = vadd.f32 0.0, %v811
        %v813 = vpop.f32.mrb[0].mxu0
        %814 = vdwg.mxu0
        %v815 = vsel %vm649, %v812, -inf
        %816 = vmax.xlane.f32.xlu0 %v815
        %v817 = vpop.xlane.xlu0 %816
        %v818 = vsub.f32 %v812, %v817
        %v819 = vmul.f32 %v818, 1.442695
        %v820 = vpow.pop %v819
        %v821 = vsel %vm649, %v820, 0.0
        %822 = vadd.xlane.f32.xlu0 %v821
        %v823 = vpop.xlane.xlu0 %822
        %v824 = vrcp.pop %v823
        %v825 = vmul.f32 %v820, %v824
        %826 = vrot.lane.b32.xlu0 %v569, 92
        %v827 = vpop.permute.xlu0 %826
        %v830 = vsel %vm649, %v825, 0
        %832 = vmatprep.subr.mxu0 0.0
        %833 = vmatpush1.msra.mxu0 %v827
        %834 = vmatprep.subr.mxu0 0.0
        %835 = vmatpush1.msra.mxu0 0.0
        %836 = vmatprep.subr.mxu0 0.0
        %837 = vmatpush1.msra.mxu0 0.0
        %838 = vmatprep.subr.mxu0 0.0
        %839 = vmatpush1.msra.mxu0 0.0
        %840 = vmatprep.subr.mxu0 0.0
        %841 = vmatpush1.msra.mxu0 0.0
        %842 = vmatprep.subr.mxu0 0.0
        %843 = vmatpush1.msra.mxu0 0.0
        %844 = vmatprep.subr.mxu0 0.0
        %845 = vmatpush1.msra.mxu0 0.0
        %846 = vmatprep.subr.mxu0 0.0
        %847 = vmatpush1.msra.mxu0 0.0
        %848 = vmatprep.subr.mxu0 0.0
        %849 = vmatpush1.msra.mxu0 0.0
        %850 = vmatprep.subr.mxu0 0.0
        %851 = vmatpush1.msra.mxu0 0.0
        %852 = vmatprep.subr.mxu0 0.0
        %853 = vmatpush1.msra.mxu0 0.0
        %854 = vmatprep.subr.mxu0 0.0
        %855 = vmatpush1.msra.mxu0 0.0
        %856 = vmatprep.subr.mxu0 0.0
        %857 = vmatpush1.msra.mxu0 0.0
        %858 = vmatprep.subr.mxu0 0.0
        %859 = vmatpush1.msra.mxu0 0.0
        %860 = vmatprep.subr.mxu0 0.0
        %861 = vmatpush1.msra.mxu0 0.0
        %862 = vmatprep.subr.mxu0 0.0
        %863 = vmatpush1.msra.mxu0 0.0
        %864 = vmatprep.subr.mxu0 0.0
        %865 = vmatpush1.msra.mxu0 0.0
        %866 = vmatprep.subr.mxu0 0.0
        %867 = vmatpush1.msra.mxu0 0.0
        %868 = vmatprep.subr.mxu0 0.0
        %869 = vmatpush1.msra.mxu0 0.0
        %870 = vmatprep.subr.mxu0 0.0
        %871 = vmatpush1.msra.mxu0 0.0
        %872 = vmatprep.subr.mxu0 0.0
        %873 = vmatpush1.msra.mxu0 0.0
        %874 = vmatprep.subr.mxu0 0.0
        %875 = vmatpush1.msra.mxu0 0.0
        %876 = vmatprep.subr.mxu0 0.0
        %877 = vmatpush1.msra.mxu0 0.0
        %878 = vmatprep.subr.mxu0 0.0
        %879 = vmatpush1.msra.mxu0 0.0
        %880 = vmatprep.subr.mxu0 0.0
        %881 = vmatpush1.msra.mxu0 0.0
        %882 = vmatprep.subr.mxu0 0.0
        %883 = vmatpush1.msra.mxu0 0.0
        %884 = vmatprep.subr.mxu0 0.0
        %885 = vmatpush1.msra.mxu0 0.0
        %886 = vmatprep.subr.mxu0 0.0
        %887 = vmatpush1.msra.mxu0 0.0
        %888 = vmatprep.subr.mxu0 0.0
        %889 = vmatpush1.msra.mxu0 0.0
        %890 = vmatprep.subr.mxu0 0.0
        %891 = vmatpush1.msra.mxu0 0.0
        %892 = vmatprep.subr.mxu0 0.0
        %893 = vmatpush1.msra.mxu0 0.0
        %894 = vmatprep.subr.mxu0 0.0
        %895 = vmatpush1.msra.mxu0 0.0
        %896 = vmatprep.mubr.f32.mxu0 0.0
        %897 = vmatmul.mubr.f32.gmra.mrb[0].mxu0 %v830
        %v898 = vpop.f32.mrb[0].mxu0
        %v899 = vadd.f32 0.0, %v898
        %v900 = vpop.f32.mrb[0].mxu0
        %901 = vdwg.mxu0
        %902 = vrot.lane.b32.xlu0 %v485, 120
        %v903 = vpop.permute.xlu0 %902
        %904 = vrot.lane.b32.xlu0 %v569, 120
        %v905 = vpop.permute.xlu0 %904
        %v906 = vsel %vm572, %v903, 0
        %v908 = vsel %vm572, %v905, 0
        %910 = vmatprep.subr.mxu0 0.0
        %911 = vmatpush1.xpose.msra.mxu0 %v908
        %912 = vmatprep.subr.mxu0 0.0
        %913 = vmatpush1.xpose.msra.mxu0 0.0
        %914 = vmatprep.subr.mxu0 0.0
        %915 = vmatpush1.xpose.msra.mxu0 0.0
        %916 = vmatprep.subr.mxu0 0.0
        %917 = vmatpush1.xpose.msra.mxu0 0.0
        %918 = vmatprep.subr.mxu0 0.0
        %919 = vmatpush1.xpose.msra.mxu0 0.0
        %920 = vmatprep.subr.mxu0 0.0
        %921 = vmatpush1.xpose.msra.mxu0 0.0
        %922 = vmatprep.subr.mxu0 0.0
        %923 = vmatpush1.xpose.msra.mxu0 0.0
        %924 = vmatprep.subr.mxu0 0.0
        %925 = vmatpush1.xpose.msra.mxu0 0.0
        %926 = vmatprep.subr.mxu0 0.0
        %927 = vmatpush1.xpose.msra.mxu0 0.0
        %928 = vmatprep.subr.mxu0 0.0
        %929 = vmatpush1.xpose.msra.mxu0 0.0
        %930 = vmatprep.subr.mxu0 0.0
        %931 = vmatpush1.xpose.msra.mxu0 0.0
        %932 = vmatprep.subr.mxu0 0.0
        %933 = vmatpush1.xpose.msra.mxu0 0.0
        %934 = vmatprep.subr.mxu0 0.0
        %935 = vmatpush1.xpose.msra.mxu0 0.0
        %936 = vmatprep.subr.mxu0 0.0
        %937 = vmatpush1.xpose.msra.mxu0 0.0
        %938 = vmatprep.subr.mxu0 0.0
        %939 = vmatpush1.xpose.msra.mxu0 0.0
        %940 = vmatprep.subr.mxu0 0.0
        %941 = vmatpush1.xpose.msra.mxu0 0.0
        %942 = vmatprep.subr.mxu0 0.0
        %943 = vmatpush1.xpose.msra.mxu0 0.0
        %944 = vmatprep.subr.mxu0 0.0
        %945 = vmatpush1.xpose.msra.mxu0 0.0
        %946 = vmatprep.subr.mxu0 0.0
        %947 = vmatpush1.xpose.msra.mxu0 0.0
        %948 = vmatprep.subr.mxu0 0.0
        %949 = vmatpush1.xpose.msra.mxu0 0.0
        %950 = vmatprep.subr.mxu0 0.0
        %951 = vmatpush1.xpose.msra.mxu0 0.0
        %952 = vmatprep.subr.mxu0 0.0
        %953 = vmatpush1.xpose.msra.mxu0 0.0
        %954 = vmatprep.subr.mxu0 0.0
        %955 = vmatpush1.xpose.msra.mxu0 0.0
        %956 = vmatprep.subr.mxu0 0.0
        %957 = vmatpush1.xpose.msra.mxu0 0.0
        %958 = vmatprep.subr.mxu0 0.0
        %959 = vmatpush1.xpose.msra.mxu0 0.0
        %960 = vmatprep.subr.mxu0 0.0
        %961 = vmatpush1.xpose.msra.mxu0 0.0
        %962 = vmatprep.subr.mxu0 0.0
        %963 = vmatpush1.xpose.msra.mxu0 0.0
        %964 = vmatprep.subr.mxu0 0.0
        %965 = vmatpush1.xpose.msra.mxu0 0.0
        %966 = vmatprep.subr.mxu0 0.0
        %967 = vmatpush1.xpose.msra.mxu0 0.0
        %968 = vmatprep.subr.mxu0 0.0
        %969 = vmatpush1.xpose.msra.mxu0 0.0
        %970 = vmatprep.subr.mxu0 0.0
        %971 = vmatpush1.xpose.msra.mxu0 0.0
        %972 = vmatprep.subr.mxu0 0.0
        %973 = vmatpush1.xpose.msra.mxu0 0.0
        %974 = vmatprep.mubr.f32.mxu0 0.0
        %975 = vmatmul.mubr.f32.gmra.mrb[0].mxu0 %v906
        %v976 = vpop.f32.mrb[0].mxu0
        %v977 = vadd.f32 0.0, %v976
        %v978 = vpop.f32.mrb[0].mxu0
        %979 = vdwg.mxu0
        %v980 = vsel %vm649, %v977, -inf
        %981 = vmax.xlane.f32.xlu0 %v980
        %v982 = vpop.xlane.xlu0 %981
        %v983 = vsub.f32 %v977, %v982
        %v984 = vmul.f32 %v983, 1.442695
        %v985 = vpow.pop %v984
        %v986 = vsel %vm649, %v985, 0.0
        %987 = vadd.xlane.f32.xlu0 %v986
        %v988 = vpop.xlane.xlu0 %987
        %v989 = vrcp.pop %v988
        %v990 = vmul.f32 %v985, %v989
        %991 = vrot.lane.b32.xlu0 %v569, 88
        %v992 = vpop.permute.xlu0 %991
        %v995 = vsel %vm649, %v990, 0
        %997 = vmatprep.subr.mxu0 0.0
        %998 = vmatpush1.msra.mxu0 %v992
        %999 = vmatprep.subr.mxu0 0.0
        %1000 = vmatpush1.msra.mxu0 0.0
        %1001 = vmatprep.subr.mxu0 0.0
        %1002 = vmatpush1.msra.mxu0 0.0
        %1003 = vmatprep.subr.mxu0 0.0
        %1004 = vmatpush1.msra.mxu0 0.0
        %1005 = vmatprep.subr.mxu0 0.0
        %1006 = vmatpush1.msra.mxu0 0.0
        %1007 = vmatprep.subr.mxu0 0.0
        %1008 = vmatpush1.msra.mxu0 0.0
        %1009 = vmatprep.subr.mxu0 0.0
        %1010 = vmatpush1.msra.mxu0 0.0
        %1011 = vmatprep.subr.mxu0 0.0
        %1012 = vmatpush1.msra.mxu0 0.0
        %1013 = vmatprep.subr.mxu0 0.0
        %1014 = vmatpush1.msra.mxu0 0.0
        %1015 = vmatprep.subr.mxu0 0.0
        %1016 = vmatpush1.msra.mxu0 0.0
        %1017 = vmatprep.subr.mxu0 0.0
        %1018 = vmatpush1.msra.mxu0 0.0
        %1019 = vmatprep.subr.mxu0 0.0
        %1020 = vmatpush1.msra.mxu0 0.0
        %1021 = vmatprep.subr.mxu0 0.0
        %1022 = vmatpush1.msra.mxu0 0.0
        %1023 = vmatprep.subr.mxu0 0.0
        %1024 = vmatpush1.msra.mxu0 0.0
        %1025 = vmatprep.subr.mxu0 0.0
        %1026 = vmatpush1.msra.mxu0 0.0
        %1027 = vmatprep.subr.mxu0 0.0
        %1028 = vmatpush1.msra.mxu0 0.0
        %1029 = vmatprep.subr.mxu0 0.0
        %1030 = vmatpush1.msra.mxu0 0.0
        %1031 = vmatprep.subr.mxu0 0.0
        %1032 = vmatpush1.msra.mxu0 0.0
        %1033 = vmatprep.subr.mxu0 0.0
        %1034 = vmatpush1.msra.mxu0 0.0
        %1035 = vmatprep.subr.mxu0 0.0
        %1036 = vmatpush1.msra.mxu0 0.0
        %1037 = vmatprep.subr.mxu0 0.0
        %1038 = vmatpush1.msra.mxu0 0.0
        %1039 = vmatprep.subr.mxu0 0.0
        %1040 = vmatpush1.msra.mxu0 0.0
        %1041 = vmatprep.subr.mxu0 0.0
        %1042 = vmatpush1.msra.mxu0 0.0
        %1043 = vmatprep.subr.mxu0 0.0
        %1044 = vmatpush1.msra.mxu0 0.0
        %1045 = vmatprep.subr.mxu0 0.0
        %1046 = vmatpush1.msra.mxu0 0.0
        %1047 = vmatprep.subr.mxu0 0.0
        %1048 = vmatpush1.msra.mxu0 0.0
        %1049 = vmatprep.subr.mxu0 0.0
        %1050 = vmatpush1.msra.mxu0 0.0
        %1051 = vmatprep.subr.mxu0 0.0
        %1052 = vmatpush1.msra.mxu0 0.0
        %1053 = vmatprep.subr.mxu0 0.0
        %1054 = vmatpush1.msra.mxu0 0.0
        %1055 = vmatprep.subr.mxu0 0.0
        %1056 = vmatpush1.msra.mxu0 0.0
        %1057 = vmatprep.subr.mxu0 0.0
        %1058 = vmatpush1.msra.mxu0 0.0
        %1059 = vmatprep.subr.mxu0 0.0
        %1060 = vmatpush1.msra.mxu0 0.0
        %1061 = vmatprep.mubr.f32.mxu0 0.0
        %1062 = vmatmul.mubr.f32.gmra.mrb[0].mxu0 %v995
        %v1063 = vpop.f32.mrb[0].mxu0
        %v1064 = vadd.f32 0.0, %v1063
        %v1065 = vpop.f32.mrb[0].mxu0
        %1066 = vdwg.mxu0
        %1067 = vrot.lane.b32.xlu0 %v485, 116
        %v1068 = vpop.permute.xlu0 %1067
        %1069 = vrot.lane.b32.xlu0 %v569, 116
        %v1070 = vpop.permute.xlu0 %1069
        %v1071 = vsel %vm572, %v1068, 0
        %v1073 = vsel %vm572, %v1070, 0
        %1075 = vmatprep.subr.mxu0 0.0
        %1076 = vmatpush1.xpose.msra.mxu0 %v1073
        %1077 = vmatprep.subr.mxu0 0.0
        %1078 = vmatpush1.xpose.msra.mxu0 0.0
        %1079 = vmatprep.subr.mxu0 0.0
        %1080 = vmatpush1.xpose.msra.mxu0 0.0
        %1081 = vmatprep.subr.mxu0 0.0
        %1082 = vmatpush1.xpose.msra.mxu0 0.0
        %1083 = vmatprep.subr.mxu0 0.0
        %1084 = vmatpush1.xpose.msra.mxu0 0.0
        %1085 = vmatprep.subr.mxu0 0.0
        %1086 = vmatpush1.xpose.msra.mxu0 0.0
        %1087 = vmatprep.subr.mxu0 0.0
        %1088 = vmatpush1.xpose.msra.mxu0 0.0
        %1089 = vmatprep.subr.mxu0 0.0
        %1090 = vmatpush1.xpose.msra.mxu0 0.0
        %1091 = vmatprep.subr.mxu0 0.0
        %1092 = vmatpush1.xpose.msra.mxu0 0.0
        %1093 = vmatprep.subr.mxu0 0.0
        %1094 = vmatpush1.xpose.msra.mxu0 0.0
        %1095 = vmatprep.subr.mxu0 0.0
        %1096 = vmatpush1.xpose.msra.mxu0 0.0
        %1097 = vmatprep.subr.mxu0 0.0
        %1098 = vmatpush1.xpose.msra.mxu0 0.0
        %1099 = vmatprep.subr.mxu0 0.0
        %1100 = vmatpush1.xpose.msra.mxu0 0.0
        %1101 = vmatprep.subr.mxu0 0.0
        %1102 = vmatpush1.xpose.msra.mxu0 0.0
        %1103 = vmatprep.subr.mxu0 0.0
        %1104 = vmatpush1.xpose.msra.mxu0 0.0
        %1105 = vmatprep.subr.mxu0 0.0
        %1106 = vmatpush1.xpose.msra.mxu0 0.0
        %1107 = vmatprep.subr.mxu0 0.0
        %1108 = vmatpush1.xpose.msra.mxu0 0.0
        %1109 = vmatprep.subr.mxu0 0.0
        %1110 = vmatpush1.xpose.msra.mxu0 0.0
        %1111 = vmatprep.subr.mxu0 0.0
        %1112 = vmatpush1.xpose.msra.mxu0 0.0
        %1113 = vmatprep.subr.mxu0 0.0
        %1114 = vmatpush1.xpose.msra.mxu0 0.0
        %1115 = vmatprep.subr.mxu0 0.0
        %1116 = vmatpush1.xpose.msra.mxu0 0.0
        %1117 = vmatprep.subr.mxu0 0.0
        %1118 = vmatpush1.xpose.msra.mxu0 0.0
        %1119 = vmatprep.subr.mxu0 0.0
        %1120 = vmatpush1.xpose.msra.mxu0 0.0
        %1121 = vmatprep.subr.mxu0 0.0
        %1122 = vmatpush1.xpose.msra.mxu0 0.0
        %1123 = vmatprep.subr.mxu0 0.0
        %1124 = vmatpush1.xpose.msra.mxu0 0.0
        %1125 = vmatprep.subr.mxu0 0.0
        %1126 = vmatpush1.xpose.msra.mxu0 0.0
        %1127 = vmatprep.subr.mxu0 0.0
        %1128 = vmatpush1.xpose.msra.mxu0 0.0
        %1129 = vmatprep.subr.mxu0 0.0
        %1130 = vmatpush1.xpose.msra.mxu0 0.0
        %1131 = vmatprep.subr.mxu0 0.0
        %1132 = vmatpush1.xpose.msra.mxu0 0.0
        %1133 = vmatprep.subr.mxu0 0.0
        %1134 = vmatpush1.xpose.msra.mxu0 0.0
        %1135 = vmatprep.subr.mxu0 0.0
        %1136 = vmatpush1.xpose.msra.mxu0 0.0
        %1137 = vmatprep.subr.mxu0 0.0
        %1138 = vmatpush1.xpose.msra.mxu0 0.0
        %1139 = vmatprep.mubr.f32.mxu0 0.0
        %1140 = vmatmul.mubr.f32.gmra.mrb[0].mxu0 %v1071
        %v1141 = vpop.f32.mrb[0].mxu0
        %v1142 = vadd.f32 0.0, %v1141
        %v1143 = vpop.f32.mrb[0].mxu0
        %1144 = vdwg.mxu0
        %v1145 = vsel %vm649, %v1142, -inf
        %1146 = vmax.xlane.f32.xlu0 %v1145
        %v1147 = vpop.xlane.xlu0 %1146
        %v1148 = vsub.f32 %v1142, %v1147
        %v1149 = vmul.f32 %v1148, 1.442695
        %v1150 = vpow.pop %v1149
        %v1151 = vsel %vm649, %v1150, 0.0
        %1152 = vadd.xlane.f32.xlu0 %v1151
        %v1153 = vpop.xlane.xlu0 %1152
        %v1154 = vrcp.pop %v1153
        %v1155 = vmul.f32 %v1150, %v1154
        %1156 = vrot.lane.b32.xlu0 %v569, 84
        %v1157 = vpop.permute.xlu0 %1156
        %v1160 = vsel %vm649, %v1155, 0
        %1162 = vmatprep.subr.mxu0 0.0
        %1163 = vmatpush1.msra.mxu0 %v1157
        %1164 = vmatprep.subr.mxu0 0.0
        %1165 = vmatpush1.msra.mxu0 0.0
        %1166 = vmatprep.subr.mxu0 0.0
        %1167 = vmatpush1.msra.mxu0 0.0
        %1168 = vmatprep.subr.mxu0 0.0
        %1169 = vmatpush1.msra.mxu0 0.0
        %1170 = vmatprep.subr.mxu0 0.0
        %1171 = vmatpush1.msra.mxu0 0.0
        %1172 = vmatprep.subr.mxu0 0.0
        %1173 = vmatpush1.msra.mxu0 0.0
        %1174 = vmatprep.subr.mxu0 0.0
        %1175 = vmatpush1.msra.mxu0 0.0
        %1176 = vmatprep.subr.mxu0 0.0
        %1177 = vmatpush1.msra.mxu0 0.0
        %1178 = vmatprep.subr.mxu0 0.0
        %1179 = vmatpush1.msra.mxu0 0.0
        %1180 = vmatprep.subr.mxu0 0.0
        %1181 = vmatpush1.msra.mxu0 0.0
        %1182 = vmatprep.subr.mxu0 0.0
        %1183 = vmatpush1.msra.mxu0 0.0
        %1184 = vmatprep.subr.mxu0 0.0
        %1185 = vmatpush1.msra.mxu0 0.0
        %1186 = vmatprep.subr.mxu0 0.0
        %1187 = vmatpush1.msra.mxu0 0.0
        %1188 = vmatprep.subr.mxu0 0.0
        %1189 = vmatpush1.msra.mxu0 0.0
        %1190 = vmatprep.subr.mxu0 0.0
        %1191 = vmatpush1.msra.mxu0 0.0
        %1192 = vmatprep.subr.mxu0 0.0
        %1193 = vmatpush1.msra.mxu0 0.0
        %1194 = vmatprep.subr.mxu0 0.0
        %1195 = vmatpush1.msra.mxu0 0.0
        %1196 = vmatprep.subr.mxu0 0.0
        %1197 = vmatpush1.msra.mxu0 0.0
        %1198 = vmatprep.subr.mxu0 0.0
        %1199 = vmatpush1.msra.mxu0 0.0
        %1200 = vmatprep.subr.mxu0 0.0
        %1201 = vmatpush1.msra.mxu0 0.0
        %1202 = vmatprep.subr.mxu0 0.0
        %1203 = vmatpush1.msra.mxu0 0.0
        %1204 = vmatprep.subr.mxu0 0.0
        %1205 = vmatpush1.msra.mxu0 0.0
        %1206 = vmatprep.subr.mxu0 0.0
        %1207 = vmatpush1.msra.mxu0 0.0
        %1208 = vmatprep.subr.mxu0 0.0
        %1209 = vmatpush1.msra.mxu0 0.0
        %1210 = vmatprep.subr.mxu0 0.0
        %1211 = vmatpush1.msra.mxu0 0.0
        %1212 = vmatprep.subr.mxu0 0.0
        %1213 = vmatpush1.msra.mxu0 0.0
        %1214 = vmatprep.subr.mxu0 0.0
        %1215 = vmatpush1.msra.mxu0 0.0
        %1216 = vmatprep.subr.mxu0 0.0
        %1217 = vmatpush1.msra.mxu0 0.0
        %1218 = vmatprep.subr.mxu0 0.0
        %1219 = vmatpush1.msra.mxu0 0.0
        %1220 = vmatprep.subr.mxu0 0.0
        %1221 = vmatpush1.msra.mxu0 0.0
        %1222 = vmatprep.subr.mxu0 0.0
        %1223 = vmatpush1.msra.mxu0 0.0
        %1224 = vmatprep.subr.mxu0 0.0
        %1225 = vmatpush1.msra.mxu0 0.0
        %1226 = vmatprep.mubr.f32.mxu0 0.0
        %1227 = vmatmul.mubr.f32.gmra.mrb[0].mxu0 %v1160
        %v1228 = vpop.f32.mrb[0].mxu0
        %v1229 = vadd.f32 0.0, %v1228
        %v1230 = vpop.f32.mrb[0].mxu0
        %1231 = vdwg.mxu0
        %1232 = vrot.lane.b32.xlu0 %v485, 112
        %v1233 = vpop.permute.xlu0 %1232
        %1234 = vrot.lane.b32.xlu0 %v569, 112
        %v1235 = vpop.permute.xlu0 %1234
        %v1236 = vsel %vm572, %v1233, 0
        %v1238 = vsel %vm572, %v1235, 0
        %1240 = vmatprep.subr.mxu0 0.0
        %1241 = vmatpush1.xpose.msra.mxu0 %v1238
        %1242 = vmatprep.subr.mxu0 0.0
        %1243 = vmatpush1.xpose.msra.mxu0 0.0
        %1244 = vmatprep.subr.mxu0 0.0
        %1245 = vmatpush1.xpose.msra.mxu0 0.0
        %1246 = vmatprep.subr.mxu0 0.0
        %1247 = vmatpush1.xpose.msra.mxu0 0.0
        %1248 = vmatprep.subr.mxu0 0.0
        %1249 = vmatpush1.xpose.msra.mxu0 0.0
        %1250 = vmatprep.subr.mxu0 0.0
        %1251 = vmatpush1.xpose.msra.mxu0 0.0
        %1252 = vmatprep.subr.mxu0 0.0
        %1253 = vmatpush1.xpose.msra.mxu0 0.0
        %1254 = vmatprep.subr.mxu0 0.0
        %1255 = vmatpush1.xpose.msra.mxu0 0.0
        %1256 = vmatprep.subr.mxu0 0.0
        %1257 = vmatpush1.xpose.msra.mxu0 0.0
        %1258 = vmatprep.subr.mxu0 0.0
        %1259 = vmatpush1.xpose.msra.mxu0 0.0
        %1260 = vmatprep.subr.mxu0 0.0
        %1261 = vmatpush1.xpose.msra.mxu0 0.0
        %1262 = vmatprep.subr.mxu0 0.0
        %1263 = vmatpush1.xpose.msra.mxu0 0.0
        %1264 = vmatprep.subr.mxu0 0.0
        %1265 = vmatpush1.xpose.msra.mxu0 0.0
        %1266 = vmatprep.subr.mxu0 0.0
        %1267 = vmatpush1.xpose.msra.mxu0 0.0
        %1268 = vmatprep.subr.mxu0 0.0
        %1269 = vmatpush1.xpose.msra.mxu0 0.0
        %1270 = vmatprep.subr.mxu0 0.0
        %1271 = vmatpush1.xpose.msra.mxu0 0.0
        %1272 = vmatprep.subr.mxu0 0.0
        %1273 = vmatpush1.xpose.msra.mxu0 0.0
        %1274 = vmatprep.subr.mxu0 0.0
        %1275 = vmatpush1.xpose.msra.mxu0 0.0
        %1276 = vmatprep.subr.mxu0 0.0
        %1277 = vmatpush1.xpose.msra.mxu0 0.0
        %1278 = vmatprep.subr.mxu0 0.0
        %1279 = vmatpush1.xpose.msra.mxu0 0.0
        %1280 = vmatprep.subr.mxu0 0.0
        %1281 = vmatpush1.xpose.msra.mxu0 0.0
        %1282 = vmatprep.subr.mxu0 0.0
        %1283 = vmatpush1.xpose.msra.mxu0 0.0
        %1284 = vmatprep.subr.mxu0 0.0
        %1285 = vmatpush1.xpose.msra.mxu0 0.0
        %1286 = vmatprep.subr.mxu0 0.0
        %1287 = vmatpush1.xpose.msra.mxu0 0.0
        %1288 = vmatprep.subr.mxu0 0.0
        %1289 = vmatpush1.xpose.msra.mxu0 0.0
        %1290 = vmatprep.subr.mxu0 0.0
        %1291 = vmatpush1.xpose.msra.mxu0 0.0
        %1292 = vmatprep.subr.mxu0 0.0
        %1293 = vmatpush1.xpose.msra.mxu0 0.0
        %1294 = vmatprep.subr.mxu0 0.0
        %1295 = vmatpush1.xpose.msra.mxu0 0.0
        %1296 = vmatprep.subr.mxu0 0.0
        %1297 = vmatpush1.xpose.msra.mxu0 0.0
        %1298 = vmatprep.subr.mxu0 0.0
        %1299 = vmatpush1.xpose.msra.mxu0 0.0
        %1300 = vmatprep.subr.mxu0 0.0
        %1301 = vmatpush1.xpose.msra.mxu0 0.0
        %1302 = vmatprep.subr.mxu0 0.0
        %1303 = vmatpush1.xpose.msra.mxu0 0.0
        %1304 = vmatprep.mubr.f32.mxu0 0.0
        %1305 = vmatmul.mubr.f32.gmra.mrb[0].mxu0 %v1236
        %v1306 = vpop.f32.mrb[0].mxu0
        %v1307 = vadd.f32 0.0, %v1306
        %v1308 = vpop.f32.mrb[0].mxu0
        %1309 = vdwg.mxu0
        %v1310 = vsel %vm649, %v1307, -inf
        %1311 = vmax.xlane.f32.xlu0 %v1310
        %v1312 = vpop.xlane.xlu0 %1311
        %v1313 = vsub.f32 %v1307, %v1312
        %v1314 = vmul.f32 %v1313, 1.442695
        %v1315 = vpow.pop %v1314
        %v1316 = vsel %vm649, %v1315, 0.0
        %1317 = vadd.xlane.f32.xlu0 %v1316
        %v1318 = vpop.xlane.xlu0 %1317
        %v1319 = vrcp.pop %v1318
        %v1320 = vmul.f32 %v1315, %v1319
        %1321 = vrot.lane.b32.xlu0 %v569, 80
        %v1322 = vpop.permute.xlu0 %1321
        %v1325 = vsel %vm649, %v1320, 0
        %1327 = vmatprep.subr.mxu0 0.0
        %1328 = vmatpush1.msra.mxu0 %v1322
        %1329 = vmatprep.subr.mxu0 0.0
        %1330 = vmatpush1.msra.mxu0 0.0
        %1331 = vmatprep.subr.mxu0 0.0
        %1332 = vmatpush1.msra.mxu0 0.0
        %1333 = vmatprep.subr.mxu0 0.0
        %1334 = vmatpush1.msra.mxu0 0.0
        %1335 = vmatprep.subr.mxu0 0.0
        %1336 = vmatpush1.msra.mxu0 0.0
        %1337 = vmatprep.subr.mxu0 0.0
        %1338 = vmatpush1.msra.mxu0 0.0
        %1339 = vmatprep.subr.mxu0 0.0
        %1340 = vmatpush1.msra.mxu0 0.0
        %1341 = vmatprep.subr.mxu0 0.0
        %1342 = vmatpush1.msra.mxu0 0.0
        %1343 = vmatprep.subr.mxu0 0.0
        %1344 = vmatpush1.msra.mxu0 0.0
        %1345 = vmatprep.subr.mxu0 0.0
        %1346 = vmatpush1.msra.mxu0 0.0
        %1347 = vmatprep.subr.mxu0 0.0
        %1348 = vmatpush1.msra.mxu0 0.0
        %1349 = vmatprep.subr.mxu0 0.0
        %1350 = vmatpush1.msra.mxu0 0.0
        %1351 = vmatprep.subr.mxu0 0.0
        %1352 = vmatpush1.msra.mxu0 0.0
        %1353 = vmatprep.subr.mxu0 0.0
        %1354 = vmatpush1.msra.mxu0 0.0
        %1355 = vmatprep.subr.mxu0 0.0
        %1356 = vmatpush1.msra.mxu0 0.0
        %1357 = vmatprep.subr.mxu0 0.0
        %1358 = vmatpush1.msra.mxu0 0.0
        %1359 = vmatprep.subr.mxu0 0.0
        %1360 = vmatpush1.msra.mxu0 0.0
        %1361 = vmatprep.subr.mxu0 0.0
        %1362 = vmatpush1.msra.mxu0 0.0
        %1363 = vmatprep.subr.mxu0 0.0
        %1364 = vmatpush1.msra.mxu0 0.0
        %1365 = vmatprep.subr.mxu0 0.0
        %1366 = vmatpush1.msra.mxu0 0.0
        %1367 = vmatprep.subr.mxu0 0.0
        %1368 = vmatpush1.msra.mxu0 0.0
        %1369 = vmatprep.subr.mxu0 0.0
        %1370 = vmatpush1.msra.mxu0 0.0
        %1371 = vmatprep.subr.mxu0 0.0
        %1372 = vmatpush1.msra.mxu0 0.0
        %1373 = vmatprep.subr.mxu0 0.0
        %1374 = vmatpush1.msra.mxu0 0.0
        %1375 = vmatprep.subr.mxu0 0.0
        %1376 = vmatpush1.msra.mxu0 0.0
        %1377 = vmatprep.subr.mxu0 0.0
        %1378 = vmatpush1.msra.mxu0 0.0
        %1379 = vmatprep.subr.mxu0 0.0
        %1380 = vmatpush1.msra.mxu0 0.0
        %1381 = vmatprep.subr.mxu0 0.0
        %1382 = vmatpush1.msra.mxu0 0.0
        %1383 = vmatprep.subr.mxu0 0.0
        %1384 = vmatpush1.msra.mxu0 0.0
        %1385 = vmatprep.subr.mxu0 0.0
        %1386 = vmatpush1.msra.mxu0 0.0
        %1387 = vmatprep.subr.mxu0 0.0
        %1388 = vmatpush1.msra.mxu0 0.0
        %1389 = vmatprep.subr.mxu0 0.0
        %1390 = vmatpush1.msra.mxu0 0.0
        %1391 = vmatprep.mubr.f32.mxu0 0.0
        %1392 = vmatmul.mubr.f32.gmra.mrb[0].mxu0 %v1325
        %v1393 = vpop.f32.mrb[0].mxu0
        %v1394 = vadd.f32 0.0, %v1393
        %v1395 = vpop.f32.mrb[0].mxu0
        %1396 = vdwg.mxu0
        %1397 = vrot.lane.b32.xlu0 %v485, 108
        %v1398 = vpop.permute.xlu0 %1397
        %1399 = vrot.lane.b32.xlu0 %v569, 108
        %v1400 = vpop.permute.xlu0 %1399
        %v1401 = vsel %vm572, %v1398, 0
        %v1403 = vsel %vm572, %v1400, 0
        %1405 = vmatprep.subr.mxu0 0.0
        %1406 = vmatpush1.xpose.msra.mxu0 %v1403
        %1407 = vmatprep.subr.mxu0 0.0
        %1408 = vmatpush1.xpose.msra.mxu0 0.0
        %1409 = vmatprep.subr.mxu0 0.0
        %1410 = vmatpush1.xpose.msra.mxu0 0.0
        %1411 = vmatprep.subr.mxu0 0.0
        %1412 = vmatpush1.xpose.msra.mxu0 0.0
        %1413 = vmatprep.subr.mxu0 0.0
        %1414 = vmatpush1.xpose.msra.mxu0 0.0
        %1415 = vmatprep.subr.mxu0 0.0
        %1416 = vmatpush1.xpose.msra.mxu0 0.0
        %1417 = vmatprep.subr.mxu0 0.0
        %1418 = vmatpush1.xpose.msra.mxu0 0.0
        %1419 = vmatprep.subr.mxu0 0.0
        %1420 = vmatpush1.xpose.msra.mxu0 0.0
        %1421 = vmatprep.subr.mxu0 0.0
        %1422 = vmatpush1.xpose.msra.mxu0 0.0
        %1423 = vmatprep.subr.mxu0 0.0
        %1424 = vmatpush1.xpose.msra.mxu0 0.0
        %1425 = vmatprep.subr.mxu0 0.0
        %1426 = vmatpush1.xpose.msra.mxu0 0.0
        %1427 = vmatprep.subr.mxu0 0.0
        %1428 = vmatpush1.xpose.msra.mxu0 0.0
        %1429 = vmatprep.subr.mxu0 0.0
        %1430 = vmatpush1.xpose.msra.mxu0 0.0
        %1431 = vmatprep.subr.mxu0 0.0
        %1432 = vmatpush1.xpose.msra.mxu0 0.0
        %1433 = vmatprep.subr.mxu0 0.0
        %1434 = vmatpush1.xpose.msra.mxu0 0.0
        %1435 = vmatprep.subr.mxu0 0.0
        %1436 = vmatpush1.xpose.msra.mxu0 0.0
        %1437 = vmatprep.subr.mxu0 0.0
        %1438 = vmatpush1.xpose.msra.mxu0 0.0
        %1439 = vmatprep.subr.mxu0 0.0
        %1440 = vmatpush1.xpose.msra.mxu0 0.0
        %1441 = vmatprep.subr.mxu0 0.0
        %1442 = vmatpush1.xpose.msra.mxu0 0.0
        %1443 = vmatprep.subr.mxu0 0.0
        %1444 = vmatpush1.xpose.msra.mxu0 0.0
        %1445 = vmatprep.subr.mxu0 0.0
        %1446 = vmatpush1.xpose.msra.mxu0 0.0
        %1447 = vmatprep.subr.mxu0 0.0
        %1448 = vmatpush1.xpose.msra.mxu0 0.0
        %1449 = vmatprep.subr.mxu0 0.0
        %1450 = vmatpush1.xpose.msra.mxu0 0.0
        %1451 = vmatprep.subr.mxu0 0.0
        %1452 = vmatpush1.xpose.msra.mxu0 0.0
        %1453 = vmatprep.subr.mxu0 0.0
        %1454 = vmatpush1.xpose.msra.mxu0 0.0
        %1455 = vmatprep.subr.mxu0 0.0
        %1456 = vmatpush1.xpose.msra.mxu0 0.0
        %1457 = vmatprep.subr.mxu0 0.0
        %1458 = vmatpush1.xpose.msra.mxu0 0.0
        %1459 = vmatprep.subr.mxu0 0.0
        %1460 = vmatpush1.xpose.msra.mxu0 0.0
        %1461 = vmatprep.subr.mxu0 0.0
        %1462 = vmatpush1.xpose.msra.mxu0 0.0
        %1463 = vmatprep.subr.mxu0 0.0
        %1464 = vmatpush1.xpose.msra.mxu0 0.0
        %1465 = vmatprep.subr.mxu0 0.0
        %1466 = vmatpush1.xpose.msra.mxu0 0.0
        %1467 = vmatprep.subr.mxu0 0.0
        %1468 = vmatpush1.xpose.msra.mxu0 0.0
        %1469 = vmatprep.mubr.f32.mxu0 0.0
        %1470 = vmatmul.mubr.f32.gmra.mrb[0].mxu0 %v1401
        %v1471 = vpop.f32.mrb[0].mxu0
        %v1472 = vadd.f32 0.0, %v1471
        %v1473 = vpop.f32.mrb[0].mxu0
        %1474 = vdwg.mxu0
        %v1475 = vsel %vm649, %v1472, -inf
        %1476 = vmax.xlane.f32.xlu0 %v1475
        %v1477 = vpop.xlane.xlu0 %1476
        %v1478 = vsub.f32 %v1472, %v1477
        %v1479 = vmul.f32 %v1478, 1.442695
        %v1480 = vpow.pop %v1479
        %v1481 = vsel %vm649, %v1480, 0.0
        %1482 = vadd.xlane.f32.xlu0 %v1481
        %v1483 = vpop.xlane.xlu0 %1482
        %v1484 = vrcp.pop %v1483
        %v1485 = vmul.f32 %v1480, %v1484
        %1486 = vrot.lane.b32.xlu0 %v569, 76
        %v1487 = vpop.permute.xlu0 %1486
        %v1490 = vsel %vm649, %v1485, 0
        %1492 = vmatprep.subr.mxu0 0.0
        %1493 = vmatpush1.msra.mxu0 %v1487
        %1494 = vmatprep.subr.mxu0 0.0
        %1495 = vmatpush1.msra.mxu0 0.0
        %1496 = vmatprep.subr.mxu0 0.0
        %1497 = vmatpush1.msra.mxu0 0.0
        %1498 = vmatprep.subr.mxu0 0.0
        %1499 = vmatpush1.msra.mxu0 0.0
        %1500 = vmatprep.subr.mxu0 0.0
        %1501 = vmatpush1.msra.mxu0 0.0
        %1502 = vmatprep.subr.mxu0 0.0
        %1503 = vmatpush1.msra.mxu0 0.0
        %1504 = vmatprep.subr.mxu0 0.0
        %1505 = vmatpush1.msra.mxu0 0.0
        %1506 = vmatprep.subr.mxu0 0.0
        %1507 = vmatpush1.msra.mxu0 0.0
        %1508 = vmatprep.subr.mxu0 0.0
        %1509 = vmatpush1.msra.mxu0 0.0
        %1510 = vmatprep.subr.mxu0 0.0
        %1511 = vmatpush1.msra.mxu0 0.0
        %1512 = vmatprep.subr.mxu0 0.0
        %1513 = vmatpush1.msra.mxu0 0.0
        %1514 = vmatprep.subr.mxu0 0.0
        %1515 = vmatpush1.msra.mxu0 0.0
        %1516 = vmatprep.subr.mxu0 0.0
        %1517 = vmatpush1.msra.mxu0 0.0
        %1518 = vmatprep.subr.mxu0 0.0
        %1519 = vmatpush1.msra.mxu0 0.0
        %1520 = vmatprep.subr.mxu0 0.0
        %1521 = vmatpush1.msra.mxu0 0.0
        %1522 = vmatprep.subr.mxu0 0.0
        %1523 = vmatpush1.msra.mxu0 0.0
        %1524 = vmatprep.subr.mxu0 0.0
        %1525 = vmatpush1.msra.mxu0 0.0
        %1526 = vmatprep.subr.mxu0 0.0
        %1527 = vmatpush1.msra.mxu0 0.0
        %1528 = vmatprep.subr.mxu0 0.0
        %1529 = vmatpush1.msra.mxu0 0.0
        %1530 = vmatprep.subr.mxu0 0.0
        %1531 = vmatpush1.msra.mxu0 0.0
        %1532 = vmatprep.subr.mxu0 0.0
        %1533 = vmatpush1.msra.mxu0 0.0
        %1534 = vmatprep.subr.mxu0 0.0
        %1535 = vmatpush1.msra.mxu0 0.0
        %1536 = vmatprep.subr.mxu0 0.0
        %1537 = vmatpush1.msra.mxu0 0.0
        %1538 = vmatprep.subr.mxu0 0.0
        %1539 = vmatpush1.msra.mxu0 0.0
        %1540 = vmatprep.subr.mxu0 0.0
        %1541 = vmatpush1.msra.mxu0 0.0
        %1542 = vmatprep.subr.mxu0 0.0
        %1543 = vmatpush1.msra.mxu0 0.0
        %1544 = vmatprep.subr.mxu0 0.0
        %1545 = vmatpush1.msra.mxu0 0.0
        %1546 = vmatprep.subr.mxu0 0.0
        %1547 = vmatpush1.msra.mxu0 0.0
        %1548 = vmatprep.subr.mxu0 0.0
        %1549 = vmatpush1.msra.mxu0 0.0
        %1550 = vmatprep.subr.mxu0 0.0
        %1551 = vmatpush1.msra.mxu0 0.0
        %1552 = vmatprep.subr.mxu0 0.0
        %1553 = vmatpush1.msra.mxu0 0.0
        %1554 = vmatprep.subr.mxu0 0.0
        %1555 = vmatpush1.msra.mxu0 0.0
        %1556 = vmatprep.mubr.f32.mxu0 0.0
        %1557 = vmatmul.mubr.f32.gmra.mrb[0].mxu0 %v1490
        %v1558 = vpop.f32.mrb[0].mxu0
        %v1559 = vadd.f32 0.0, %v1558
        %v1560 = vpop.f32.mrb[0].mxu0
        %1561 = vdwg.mxu0
        %1562 = vrot.lane.b32.xlu0 %v485, 104
        %v1563 = vpop.permute.xlu0 %1562
        %1564 = vrot.lane.b32.xlu0 %v569, 104
        %v1565 = vpop.permute.xlu0 %1564
        %v1566 = vsel %vm572, %v1563, 0
        %v1568 = vsel %vm572, %v1565, 0
        %1570 = vmatprep.subr.mxu0 0.0
        %1571 = vmatpush1.xpose.msra.mxu0 %v1568
        %1572 = vmatprep.subr.mxu0 0.0
        %1573 = vmatpush1.xpose.msra.mxu0 0.0
        %1574 = vmatprep.subr.mxu0 0.0
        %1575 = vmatpush1.xpose.msra.mxu0 0.0
        %1576 = vmatprep.subr.mxu0 0.0
        %1577 = vmatpush1.xpose.msra.mxu0 0.0
        %1578 = vmatprep.subr.mxu0 0.0
        %1579 = vmatpush1.xpose.msra.mxu0 0.0
        %1580 = vmatprep.subr.mxu0 0.0
        %1581 = vmatpush1.xpose.msra.mxu0 0.0
        %1582 = vmatprep.subr.mxu0 0.0
        %1583 = vmatpush1.xpose.msra.mxu0 0.0
        %1584 = vmatprep.subr.mxu0 0.0
        %1585 = vmatpush1.xpose.msra.mxu0 0.0
        %1586 = vmatprep.subr.mxu0 0.0
        %1587 = vmatpush1.xpose.msra.mxu0 0.0
        %1588 = vmatprep.subr.mxu0 0.0
        %1589 = vmatpush1.xpose.msra.mxu0 0.0
        %1590 = vmatprep.subr.mxu0 0.0
        %1591 = vmatpush1.xpose.msra.mxu0 0.0
        %1592 = vmatprep.subr.mxu0 0.0
        %1593 = vmatpush1.xpose.msra.mxu0 0.0
        %1594 = vmatprep.subr.mxu0 0.0
        %1595 = vmatpush1.xpose.msra.mxu0 0.0
        %1596 = vmatprep.subr.mxu0 0.0
        %1597 = vmatpush1.xpose.msra.mxu0 0.0
        %1598 = vmatprep.subr.mxu0 0.0
        %1599 = vmatpush1.xpose.msra.mxu0 0.0
        %1600 = vmatprep.subr.mxu0 0.0
        %1601 = vmatpush1.xpose.msra.mxu0 0.0
        %1602 = vmatprep.subr.mxu0 0.0
        %1603 = vmatpush1.xpose.msra.mxu0 0.0
        %1604 = vmatprep.subr.mxu0 0.0
        %1605 = vmatpush1.xpose.msra.mxu0 0.0
        %1606 = vmatprep.subr.mxu0 0.0
        %1607 = vmatpush1.xpose.msra.mxu0 0.0
        %1608 = vmatprep.subr.mxu0 0.0
        %1609 = vmatpush1.xpose.msra.mxu0 0.0
        %1610 = vmatprep.subr.mxu0 0.0
        %1611 = vmatpush1.xpose.msra.mxu0 0.0
        %1612 = vmatprep.subr.mxu0 0.0
        %1613 = vmatpush1.xpose.msra.mxu0 0.0
        %1614 = vmatprep.subr.mxu0 0.0
        %1615 = vmatpush1.xpose.msra.mxu0 0.0
        %1616 = vmatprep.subr.mxu0 0.0
        %1617 = vmatpush1.xpose.msra.mxu0 0.0
        %1618 = vmatprep.subr.mxu0 0.0
        %1619 = vmatpush1.xpose.msra.mxu0 0.0
        %1620 = vmatprep.subr.mxu0 0.0
        %1621 = vmatpush1.xpose.msra.mxu0 0.0
        %1622 = vmatprep.subr.mxu0 0.0
        %1623 = vmatpush1.xpose.msra.mxu0 0.0
        %1624 = vmatprep.subr.mxu0 0.0
        %1625 = vmatpush1.xpose.msra.mxu0 0.0
        %1626 = vmatprep.subr.mxu0 0.0
        %1627 = vmatpush1.xpose.msra.mxu0 0.0
        %1628 = vmatprep.subr.mxu0 0.0
        %1629 = vmatpush1.xpose.msra.mxu0 0.0
        %1630 = vmatprep.subr.mxu0 0.0
        %1631 = vmatpush1.xpose.msra.mxu0 0.0
        %1632 = vmatprep.subr.mxu0 0.0
        %1633 = vmatpush1.xpose.msra.mxu0 0.0
        %1634 = vmatprep.mubr.f32.mxu0 0.0
        %1635 = vmatmul.mubr.f32.gmra.mrb[0].mxu0 %v1566
        %v1636 = vpop.f32.mrb[0].mxu0
        %v1637 = vadd.f32 0.0, %v1636
        %v1638 = vpop.f32.mrb[0].mxu0
        %1639 = vdwg.mxu0
        %v1640 = vsel %vm649, %v1637, -inf
        %1641 = vmax.xlane.f32.xlu0 %v1640
        %v1642 = vpop.xlane.xlu0 %1641
        %v1643 = vsub.f32 %v1637, %v1642
        %v1644 = vmul.f32 %v1643, 1.442695
        %v1645 = vpow.pop %v1644
        %v1646 = vsel %vm649, %v1645, 0.0
        %1647 = vadd.xlane.f32.xlu0 %v1646
        %v1648 = vpop.xlane.xlu0 %1647
        %v1649 = vrcp.pop %v1648
        %v1650 = vmul.f32 %v1645, %v1649
        %1651 = vrot.lane.b32.xlu0 %v569, 72
        %v1652 = vpop.permute.xlu0 %1651
        %v1655 = vsel %vm649, %v1650, 0
        %1657 = vmatprep.subr.mxu0 0.0
        %1658 = vmatpush1.msra.mxu0 %v1652
        %1659 = vmatprep.subr.mxu0 0.0
        %1660 = vmatpush1.msra.mxu0 0.0
        %1661 = vmatprep.subr.mxu0 0.0
        %1662 = vmatpush1.msra.mxu0 0.0
        %1663 = vmatprep.subr.mxu0 0.0
        %1664 = vmatpush1.msra.mxu0 0.0
        %1665 = vmatprep.subr.mxu0 0.0
        %1666 = vmatpush1.msra.mxu0 0.0
        %1667 = vmatprep.subr.mxu0 0.0
        %1668 = vmatpush1.msra.mxu0 0.0
        %1669 = vmatprep.subr.mxu0 0.0
        %1670 = vmatpush1.msra.mxu0 0.0
        %1671 = vmatprep.subr.mxu0 0.0
        %1672 = vmatpush1.msra.mxu0 0.0
        %1673 = vmatprep.subr.mxu0 0.0
        %1674 = vmatpush1.msra.mxu0 0.0
        %1675 = vmatprep.subr.mxu0 0.0
        %1676 = vmatpush1.msra.mxu0 0.0
        %1677 = vmatprep.subr.mxu0 0.0
        %1678 = vmatpush1.msra.mxu0 0.0
        %1679 = vmatprep.subr.mxu0 0.0
        %1680 = vmatpush1.msra.mxu0 0.0
        %1681 = vmatprep.subr.mxu0 0.0
        %1682 = vmatpush1.msra.mxu0 0.0
        %1683 = vmatprep.subr.mxu0 0.0
        %1684 = vmatpush1.msra.mxu0 0.0
        %1685 = vmatprep.subr.mxu0 0.0
        %1686 = vmatpush1.msra.mxu0 0.0
        %1687 = vmatprep.subr.mxu0 0.0
        %1688 = vmatpush1.msra.mxu0 0.0
        %1689 = vmatprep.subr.mxu0 0.0
        %1690 = vmatpush1.msra.mxu0 0.0
        %1691 = vmatprep.subr.mxu0 0.0
        %1692 = vmatpush1.msra.mxu0 0.0
        %1693 = vmatprep.subr.mxu0 0.0
        %1694 = vmatpush1.msra.mxu0 0.0
        %1695 = vmatprep.subr.mxu0 0.0
        %1696 = vmatpush1.msra.mxu0 0.0
        %1697 = vmatprep.subr.mxu0 0.0
        %1698 = vmatpush1.msra.mxu0 0.0
        %1699 = vmatprep.subr.mxu0 0.0
        %1700 = vmatpush1.msra.mxu0 0.0
        %1701 = vmatprep.subr.mxu0 0.0
        %1702 = vmatpush1.msra.mxu0 0.0
        %1703 = vmatprep.subr.mxu0 0.0
        %1704 = vmatpush1.msra.mxu0 0.0
        %1705 = vmatprep.subr.mxu0 0.0
        %1706 = vmatpush1.msra.mxu0 0.0
        %1707 = vmatprep.subr.mxu0 0.0
        %1708 = vmatpush1.msra.mxu0 0.0
        %1709 = vmatprep.subr.mxu0 0.0
        %1710 = vmatpush1.msra.mxu0 0.0
        %1711 = vmatprep.subr.mxu0 0.0
        %1712 = vmatpush1.msra.mxu0 0.0
        %1713 = vmatprep.subr.mxu0 0.0
        %1714 = vmatpush1.msra.mxu0 0.0
        %1715 = vmatprep.subr.mxu0 0.0
        %1716 = vmatpush1.msra.mxu0 0.0
        %1717 = vmatprep.subr.mxu0 0.0
        %1718 = vmatpush1.msra.mxu0 0.0
        %1719 = vmatprep.subr.mxu0 0.0
        %1720 = vmatpush1.msra.mxu0 0.0
        %1721 = vmatprep.mubr.f32.mxu0 0.0
        %1722 = vmatmul.mubr.f32.gmra.mrb[0].mxu0 %v1655
        %v1723 = vpop.f32.mrb[0].mxu0
        %v1724 = vadd.f32 0.0, %v1723
        %v1725 = vpop.f32.mrb[0].mxu0
        %1726 = vdwg.mxu0
        %1727 = vrot.lane.b32.xlu0 %v485, 100
        %v1728 = vpop.permute.xlu0 %1727
        %1729 = vrot.lane.b32.xlu0 %v569, 100
        %v1730 = vpop.permute.xlu0 %1729
        %v1731 = vsel %vm572, %v1728, 0
        %v1733 = vsel %vm572, %v1730, 0
        %1735 = vmatprep.subr.mxu0 0.0
        %1736 = vmatpush1.xpose.msra.mxu0 %v1733
        %1737 = vmatprep.subr.mxu0 0.0
        %1738 = vmatpush1.xpose.msra.mxu0 0.0
        %1739 = vmatprep.subr.mxu0 0.0
        %1740 = vmatpush1.xpose.msra.mxu0 0.0
        %1741 = vmatprep.subr.mxu0 0.0
        %1742 = vmatpush1.xpose.msra.mxu0 0.0
        %1743 = vmatprep.subr.mxu0 0.0
        %1744 = vmatpush1.xpose.msra.mxu0 0.0
        %1745 = vmatprep.subr.mxu0 0.0
        %1746 = vmatpush1.xpose.msra.mxu0 0.0
        %1747 = vmatprep.subr.mxu0 0.0
        %1748 = vmatpush1.xpose.msra.mxu0 0.0
        %1749 = vmatprep.subr.mxu0 0.0
        %1750 = vmatpush1.xpose.msra.mxu0 0.0
        %1751 = vmatprep.subr.mxu0 0.0
        %1752 = vmatpush1.xpose.msra.mxu0 0.0
        %1753 = vmatprep.subr.mxu0 0.0
        %1754 = vmatpush1.xpose.msra.mxu0 0.0
        %1755 = vmatprep.subr.mxu0 0.0
        %1756 = vmatpush1.xpose.msra.mxu0 0.0
        %1757 = vmatprep.subr.mxu0 0.0
        %1758 = vmatpush1.xpose.msra.mxu0 0.0
        %1759 = vmatprep.subr.mxu0 0.0
        %1760 = vmatpush1.xpose.msra.mxu0 0.0
        %1761 = vmatprep.subr.mxu0 0.0
        %1762 = vmatpush1.xpose.msra.mxu0 0.0
        %1763 = vmatprep.subr.mxu0 0.0
        %1764 = vmatpush1.xpose.msra.mxu0 0.0
        %1765 = vmatprep.subr.mxu0 0.0
        %1766 = vmatpush1.xpose.msra.mxu0 0.0
        %1767 = vmatprep.subr.mxu0 0.0
        %1768 = vmatpush1.xpose.msra.mxu0 0.0
        %1769 = vmatprep.subr.mxu0 0.0
        %1770 = vmatpush1.xpose.msra.mxu0 0.0
        %1771 = vmatprep.subr.mxu0 0.0
        %1772 = vmatpush1.xpose.msra.mxu0 0.0
        %1773 = vmatprep.subr.mxu0 0.0
        %1774 = vmatpush1.xpose.msra.mxu0 0.0
        %1775 = vmatprep.subr.mxu0 0.0
        %1776 = vmatpush1.xpose.msra.mxu0 0.0
        %1777 = vmatprep.subr.mxu0 0.0
        %1778 = vmatpush1.xpose.msra.mxu0 0.0
        %1779 = vmatprep.subr.mxu0 0.0
        %1780 = vmatpush1.xpose.msra.mxu0 0.0
        %1781 = vmatprep.subr.mxu0 0.0
        %1782 = vmatpush1.xpose.msra.mxu0 0.0
        %1783 = vmatprep.subr.mxu0 0.0
        %1784 = vmatpush1.xpose.msra.mxu0 0.0
        %1785 = vmatprep.subr.mxu0 0.0
        %1786 = vmatpush1.xpose.msra.mxu0 0.0
        %1787 = vmatprep.subr.mxu0 0.0
        %1788 = vmatpush1.xpose.msra.mxu0 0.0
        %1789 = vmatprep.subr.mxu0 0.0
        %1790 = vmatpush1.xpose.msra.mxu0 0.0
        %1791 = vmatprep.subr.mxu0 0.0
        %1792 = vmatpush1.xpose.msra.mxu0 0.0
        %1793 = vmatprep.subr.mxu0 0.0
        %1794 = vmatpush1.xpose.msra.mxu0 0.0
        %1795 = vmatprep.subr.mxu0 0.0
        %1796 = vmatpush1.xpose.msra.mxu0 0.0
        %1797 = vmatprep.subr.mxu0 0.0
        %1798 = vmatpush1.xpose.msra.mxu0 0.0
        %1799 = vmatprep.mubr.f32.mxu0 0.0
        %1800 = vmatmul.mubr.f32.gmra.mrb[0].mxu0 %v1731
        %v1801 = vpop.f32.mrb[0].mxu0
        %v1802 = vadd.f32 0.0, %v1801
        %v1803 = vpop.f32.mrb[0].mxu0
        %1804 = vdwg.mxu0
        %v1805 = vsel %vm649, %v1802, -inf
        %1806 = vmax.xlane.f32.xlu0 %v1805
        %v1807 = vpop.xlane.xlu0 %1806
        %v1808 = vsub.f32 %v1802, %v1807
        %v1809 = vmul.f32 %v1808, 1.442695
        %v1810 = vpow.pop %v1809
        %v1811 = vsel %vm649, %v1810, 0.0
        %1812 = vadd.xlane.f32.xlu0 %v1811
        %v1813 = vpop.xlane.xlu0 %1812
        %v1814 = vrcp.pop %v1813
        %v1815 = vmul.f32 %v1810, %v1814
        %1816 = vrot.lane.b32.xlu0 %v569, 68
        %v1817 = vpop.permute.xlu0 %1816
        %v1820 = vsel %vm649, %v1815, 0
        %1822 = vmatprep.subr.mxu0 0.0
        %1823 = vmatpush1.msra.mxu0 %v1817
        %1824 = vmatprep.subr.mxu0 0.0
        %1825 = vmatpush1.msra.mxu0 0.0
        %1826 = vmatprep.subr.mxu0 0.0
        %1827 = vmatpush1.msra.mxu0 0.0
        %1828 = vmatprep.subr.mxu0 0.0
        %1829 = vmatpush1.msra.mxu0 0.0
        %1830 = vmatprep.subr.mxu0 0.0
        %1831 = vmatpush1.msra.mxu0 0.0
        %1832 = vmatprep.subr.mxu0 0.0
        %1833 = vmatpush1.msra.mxu0 0.0
        %1834 = vmatprep.subr.mxu0 0.0
        %1835 = vmatpush1.msra.mxu0 0.0
        %1836 = vmatprep.subr.mxu0 0.0
        %1837 = vmatpush1.msra.mxu0 0.0
        %1838 = vmatprep.subr.mxu0 0.0
        %1839 = vmatpush1.msra.mxu0 0.0
        %1840 = vmatprep.subr.mxu0 0.0
        %1841 = vmatpush1.msra.mxu0 0.0
        %1842 = vmatprep.subr.mxu0 0.0
        %1843 = vmatpush1.msra.mxu0 0.0
        %1844 = vmatprep.subr.mxu0 0.0
        %1845 = vmatpush1.msra.mxu0 0.0
        %1846 = vmatprep.subr.mxu0 0.0
        %1847 = vmatpush1.msra.mxu0 0.0
        %1848 = vmatprep.subr.mxu0 0.0
        %1849 = vmatpush1.msra.mxu0 0.0
        %1850 = vmatprep.subr.mxu0 0.0
        %1851 = vmatpush1.msra.mxu0 0.0
        %1852 = vmatprep.subr.mxu0 0.0
        %1853 = vmatpush1.msra.mxu0 0.0
        %1854 = vmatprep.subr.mxu0 0.0
        %1855 = vmatpush1.msra.mxu0 0.0
        %1856 = vmatprep.subr.mxu0 0.0
        %1857 = vmatpush1.msra.mxu0 0.0
        %1858 = vmatprep.subr.mxu0 0.0
        %1859 = vmatpush1.msra.mxu0 0.0
        %1860 = vmatprep.subr.mxu0 0.0
        %1861 = vmatpush1.msra.mxu0 0.0
        %1862 = vmatprep.subr.mxu0 0.0
        %1863 = vmatpush1.msra.mxu0 0.0
        %1864 = vmatprep.subr.mxu0 0.0
        %1865 = vmatpush1.msra.mxu0 0.0
        %1866 = vmatprep.subr.mxu0 0.0
        %1867 = vmatpush1.msra.mxu0 0.0
        %1868 = vmatprep.subr.mxu0 0.0
        %1869 = vmatpush1.msra.mxu0 0.0
        %1870 = vmatprep.subr.mxu0 0.0
        %1871 = vmatpush1.msra.mxu0 0.0
        %1872 = vmatprep.subr.mxu0 0.0
        %1873 = vmatpush1.msra.mxu0 0.0
        %1874 = vmatprep.subr.mxu0 0.0
        %1875 = vmatpush1.msra.mxu0 0.0
        %1876 = vmatprep.subr.mxu0 0.0
        %1877 = vmatpush1.msra.mxu0 0.0
        %1878 = vmatprep.subr.mxu0 0.0
        %1879 = vmatpush1.msra.mxu0 0.0
        %1880 = vmatprep.subr.mxu0 0.0
        %1881 = vmatpush1.msra.mxu0 0.0
        %1882 = vmatprep.subr.mxu0 0.0
        %1883 = vmatpush1.msra.mxu0 0.0
        %1884 = vmatprep.subr.mxu0 0.0
        %1885 = vmatpush1.msra.mxu0 0.0
        %1886 = vmatprep.mubr.f32.mxu0 0.0
        %1887 = vmatmul.mubr.f32.gmra.mrb[0].mxu0 %v1820
        %v1888 = vpop.f32.mrb[0].mxu0
        %v1889 = vadd.f32 0.0, %v1888
        %v1890 = vpop.f32.mrb[0].mxu0
        %1891 = vdwg.mxu0
        %1893 = vrot.lane.b32.xlu0 %v899, 4
        %v1894 = vpop.permute.xlu0 %1893
        %1897 = vrot.lane.b32.xlu0 %v1064, 8
        %v1898 = vpop.permute.xlu0 %1897
        %1901 = vrot.lane.b32.xlu0 %v1229, 12
        %v1902 = vpop.permute.xlu0 %1901
        %1905 = vrot.lane.b32.xlu0 %v1394, 16
        %v1906 = vpop.permute.xlu0 %1905
        %1909 = vrot.lane.b32.xlu0 %v1559, 20
        %v1910 = vpop.permute.xlu0 %1909
        %1913 = vrot.lane.b32.xlu0 %v1724, 24
        %v1914 = vpop.permute.xlu0 %1913
        %1917 = vrot.lane.b32.xlu0 %v1889, 28
        %v1918 = vpop.permute.xlu0 %1917
        %v1920 = vsel %vm572, %v734, %v1894
        %v1921 = vsel %vm649, %v1920, %v1898
        %vm1922 = vcmask 97280
        %v1923 = vsel %vm1922, %v1921, %v1902
        %vm1924 = vcmask 130048
        %v1925 = vsel %vm1924, %v1923, %v1906
        %vm1926 = vcmask 162816
        %v1927 = vsel %vm1926, %v1925, %v1910
        %vm1928 = vcmask 195584
        %v1929 = vsel %vm1928, %v1927, %v1914
        %vm1930 = vcmask 228352
        %v1931 = vsel %vm1930, %v1929, %v1918
        %v1932 = vld [vmem:[#allocation10] sm:$0xff]
        %v1933 = vld [vmem:[#allocation10 + $0x8] sm:$0xff]
        %v1934 = vld [vmem:[#allocation10 + $0x10] sm:$0xff]
        %v1935 = vld [vmem:[#allocation10 + $0x18] sm:$0xff]
        %v1936 = vld [vmem:[%s7] sm:$0x1]
        %v1938 = vlaneseq
        %v1939 = vshrl.u32 %v1938, 7
        %v1940 = vsub.s32 0, %v1939
        %v1941 = vrot.slane %v1936, %v1940
        %v1944 = vsel %vm414, %v1931, 0
        %1946 = vmatprep.subr.mxu0 0.0
        %1947 = vmatpush1.msra.mxu0 %v1932
        %1948 = vmatprep.subr.mxu0 0.0
        %1949 = vmatpush1.msra.mxu0 %v1933
        %1950 = vmatprep.subr.mxu0 0.0
        %1951 = vmatpush1.msra.mxu0 %v1934
        %1952 = vmatprep.subr.mxu0 0.0
        %1953 = vmatpush1.msra.mxu0 %v1935
        %1954 = vmatprep.subr.mxu0 0.0
        %1955 = vmatpush1.msra.mxu0 0.0
        %1956 = vmatprep.subr.mxu0 0.0
        %1957 = vmatpush1.msra.mxu0 0.0
        %1958 = vmatprep.subr.mxu0 0.0
        %1959 = vmatpush1.msra.mxu0 0.0
        %1960 = vmatprep.subr.mxu0 0.0
        %1961 = vmatpush1.msra.mxu0 0.0
        %1962 = vmatprep.subr.mxu0 0.0
        %1963 = vmatpush1.msra.mxu0 0.0
        %1964 = vmatprep.subr.mxu0 0.0
        %1965 = vmatpush1.msra.mxu0 0.0
        %1966 = vmatprep.subr.mxu0 0.0
        %1967 = vmatpush1.msra.mxu0 0.0
        %1968 = vmatprep.subr.mxu0 0.0
        %1969 = vmatpush1.msra.mxu0 0.0
        %1970 = vmatprep.subr.mxu0 0.0
        %1971 = vmatpush1.msra.mxu0 0.0
        %1972 = vmatprep.subr.mxu0 0.0
        %1973 = vmatpush1.msra.mxu0 0.0
        %1974 = vmatprep.subr.mxu0 0.0
        %1975 = vmatpush1.msra.mxu0 0.0
        %1976 = vmatprep.subr.mxu0 0.0
        %1977 = vmatpush1.msra.mxu0 0.0
        %1978 = vmatprep.subr.mxu0 0.0
        %1979 = vmatpush1.msra.mxu0 0.0
        %1980 = vmatprep.subr.mxu0 0.0
        %1981 = vmatpush1.msra.mxu0 0.0
        %1982 = vmatprep.subr.mxu0 0.0
        %1983 = vmatpush1.msra.mxu0 0.0
        %1984 = vmatprep.subr.mxu0 0.0
        %1985 = vmatpush1.msra.mxu0 0.0
        %1986 = vmatprep.subr.mxu0 0.0
        %1987 = vmatpush1.msra.mxu0 0.0
        %1988 = vmatprep.subr.mxu0 0.0
        %1989 = vmatpush1.msra.mxu0 0.0
        %1990 = vmatprep.subr.mxu0 0.0
        %1991 = vmatpush1.msra.mxu0 0.0
        %1992 = vmatprep.subr.mxu0 0.0
        %1993 = vmatpush1.msra.mxu0 0.0
        %1994 = vmatprep.subr.mxu0 0.0
        %1995 = vmatpush1.msra.mxu0 0.0
        %1996 = vmatprep.subr.mxu0 0.0
        %1997 = vmatpush1.msra.mxu0 0.0
        %1998 = vmatprep.subr.mxu0 0.0
        %1999 = vmatpush1.msra.mxu0 0.0
        %2000 = vmatprep.subr.mxu0 0.0
        %2001 = vmatpush1.msra.mxu0 0.0
        %2002 = vmatprep.subr.mxu0 0.0
        %2003 = vmatpush1.msra.mxu0 0.0
        %2004 = vmatprep.subr.mxu0 0.0
        %2005 = vmatpush1.msra.mxu0 0.0
        %2006 = vmatprep.subr.mxu0 0.0
        %2007 = vmatpush1.msra.mxu0 0.0
        %2008 = vmatprep.subr.mxu0 0.0
        %2009 = vmatpush1.msra.mxu0 0.0
        %2010 = vmatprep.mubr.f32.mxu0 0.0
        %2011 = vmatmul.mubr.f32.gmra.mrb[0].mxu0 %v1944
        %v2012 = vpop.f32.mrb[0].mxu0
        %v2013 = vadd.f32 %v1941, %v2012
        %v2014 = vpop.f32.mrb[0].mxu0
        %2015 = vdwg.mxu0
        %2016 = vst.msk [vmem:[%s400] sm:$0xff] %vm414, %v2013
        %s2017 = sand.u32 %s215, 1
        %s2018 = scalar_lea.sflag [#allocation4], %s2017
        %s2019 = sand.u32 %s215, 1
        %s2020 = smul.addr %s2019, 8
        %s2021 = scalar_lea.vmem [#allocation11], %s2020
        // Predicated region
        $region73: #{tpu_custom_call.1} parent=51 // pred_check
          %p2022 = pneg %p225
        $region74: #{tpu_custom_call.1} parent=51 // pred_check_branch
          %2024 = sbr.rel (%p2022) target = $region76
        $region75: #{tpu_custom_call.1} parent=51 // pred_region
          %s2026 = ssub.s32 128, 128
          %2027 = vsyncadd %s2018, %s2026
          %s2028 = smul.addr %s29, 128
          %s2029 = scalar_lea.hbm %s8, %s2028
          %s2031 = sshll.u32 %s2021, 4
          %s2032 = int_to_ptr.vmem [resolvable:$true] %s2031
          %2034 = dma.vmem_to_hbm [thread:$0]  %s2032, 128, %s2029, %s2018
        $region76: #{tpu_custom_call.1} parent=51 // pred_fallthru
          _
      $region52: #{tpu_custom_call.1} parent=5 // pred_fallthru
        _
      %p2035 = scmp.le.s32.totalorder 2, %s24
      // Predicated region
      $region77: #{tpu_custom_call.1} parent=5 // pred_check
        %p2036 = pneg %p2035
      $region78: #{tpu_custom_call.1} parent=5 // pred_check_branch
        %2038 = sbr.rel (%p2036) target = $region80
      $region79: #{tpu_custom_call.1} parent=5 // pred_region
        %s2039 = ssub.s32 %s24, 2
        // Predicated region
        $region81: #{tpu_custom_call.1} parent=79 // pred_check
          %p2040 = pneg %p231
        $region82: #{tpu_custom_call.1} parent=79 // pred_check_branch
          %2042 = sbr.rel (%p2040) target = $region84
        $region83: #{tpu_custom_call.1} parent=79 // pred_region
          %s2043 = sand.u32 %s216, 1
          %s2044 = scalar_lea.sflag [#allocation4], %s2043
          %s2045 = sand.u32 %s216, 1
          %s2046 = smul.addr %s2045, 8
          %s2047 = scalar_lea.vmem [#allocation11], %s2046
          %2048 = dma.done %s2044, 128
        $region84: #{tpu_custom_call.1} parent=79 // pred_fallthru
          _
      $region80: #{tpu_custom_call.1} parent=5 // pred_fallthru
        _
    $region6: #{tpu_custom_call.1} parent=1 // loop_footer
      %s28 = sadd.s32 1, %s24
    $region7: #{tpu_custom_call.1} parent=1 // loop_footer_branch
      %23 = sbr.rel target = $region3
    $region8: #{tpu_custom_call.1} parent=1 // loop_exit
      _
    %2049 = vsyncpa [#allocation3], 1
    %s2050 = scalar_lea.sflag [#allocation3], 1
    %2051 = vsyncpa %s2050, 1
    %2052 = vsyncpa [#allocation6], 1
    %s2053 = scalar_lea.sflag [#allocation6], 1
    %2054 = vsyncpa %s2053, 1
    %2055 = vsyncpa [#allocation9], 1
    %2056 = vsyncpa [#allocation4], 1
    %s2057 = scalar_lea.sflag [#allocation4], 1
    %2058 = vsyncpa %s2057, 1

</llo_original>
